<compile_context>
chip_gen: v6e
topology: v6e:2x2x1
jax: 0.10.0
libtpu: 0.0.40
codegen_flags: <defaults>
</compile_context>

<pallas_src>
import functools
import math

import jax
import jax.numpy as jnp
from jax import lax
from jax.experimental import pallas as pl
from jax.experimental.pallas import tpu as pltpu


def segnet_kernel(xf_ref, valid_ref, last_ref, onehot_ref,
                  wih0_ref, whh0_ref, b0_ref,
                  w1_ref, b1_ref,
                  wfc1_ref, bfc1_ref, wfc2_ref, bfc2_ref,
                  loss_ref, hcat_ref, *, T, B_pad, B_real):
    H = whh0_ref.shape[0]
    G = 4 * H

    # ---- Hoisted layer-0 input projection: one bf16 x bf16 MXU contraction
    #      (f32 accumulate), bias folded in.  Removes T small matmuls + T bias
    #      broadcasts from the serial critical path.
    gx0 = (jnp.dot(xf_ref[...], wih0_ref[...],
                   preferred_element_type=jnp.float32)
           + b0_ref[...])                                   # (T*B_pad, 4H) f32

    whh0 = whh0_ref[...]                                    # (H, 4H)  bf16
    w1 = w1_ref[...]                                        # (2H, 4H) bf16 = [wih1; whh1]
    b1 = jnp.broadcast_to(b1_ref[...], (B_pad, G))          # hoisted (no per-step bcast)
    valid = valid_ref[...]                                  # (T*B_pad, 1) f32 0/1, hoisted

    # Persistent [h0 | h1] bf16 operand for the fused layer-1 matmul; also
    # feeds the layer-0 recurrent matmul (previous step's h0 in lanes [0:H]).
    hcat_ref[...] = jnp.zeros((B_pad, 2 * H), jnp.bfloat16)

    zeros = jnp.zeros((B_pad, H), jnp.float32)
    h0 = c0 = h1 = c1 = zeros

    def cell(gates, c):
        # One full-width (4H-lane) sigmoid + one tanh on the g block.
        # PyTorch gate order: i, f, g, o.
        sig = jax.nn.sigmoid(gates)
        i = sig[:, 0 * H:1 * H]
        f = sig[:, 1 * H:2 * H]
        o = sig[:, 3 * H:4 * H]
        g = jnp.tanh(gates[:, 2 * H:3 * H])
        c_new = f * c + i * g
        return o * jnp.tanh(c_new), c_new

    # ---- Fully unrolled recurrence (T static & small): straight-line code,
    #      all slices static AND sublane-tile aligned (B_pad multiple of 8).
    for t in range(T):
        r0 = t * B_pad
        v = valid[r0:r0 + B_pad, :]                         # (B_pad, 1) f32

        # layer 0: input part precomputed in gx0; recurrent operand (previous
        # h0, already bf16) read straight from the scratch slab.
        gates0 = gx0[r0:r0 + B_pad, :] + jnp.dot(
            hcat_ref[:, 0:H], whh0, preferred_element_type=jnp.float32)
        h0n, c0n = cell(gates0, c0)
        h0 = h0 + v * (h0n - h0)        # packed-sequence masking (lerp, no compare)
        c0 = c0 + v * (c0n - c0)
        hcat_ref[:, 0:H] = h0.astype(jnp.bfloat16)

        # layer 1: fused [h0, h1] @ [wih1; whh1] -> one matmul per step,
        # operand read directly from the persistent scratch (no concatenate).
        gates1 = jnp.dot(hcat_ref[...], w1,
                         preferred_element_type=jnp.float32) + b1
        h1n, c1n = cell(gates1, c1)
        h1 = h1 + v * (h1n - h1)
        c1 = c1 + v * (c1n - c1)
        hcat_ref[:, H:2 * H] = h1.astype(jnp.bfloat16)

    # pad_packed_sequence(total_length=T)[:, -1, :]:
    #   top-layer hidden at t = T-1 if the sequence runs the full length,
    #   otherwise the zero padding.  (last mask precomputed in the wrapper.)
    out_last = last_ref[...] * h1                            # (B_pad, H) f32

    # fc: Linear(H, 32) -> LeakyReLU(0.2) -> Linear(32, C)
    z1 = jnp.dot(out_last.astype(jnp.bfloat16), wfc1_ref[...],
                 preferred_element_type=jnp.float32) + bfc1_ref[...]
    a1 = jnp.where(z1 > 0, z1, 0.2 * z1)
    logits = jnp.dot(a1.astype(jnp.bfloat16), wfc2_ref[...],
                     preferred_element_type=jnp.float32) + bfc2_ref[...]  # (B_pad, C)

    # cross entropy (mean over the REAL rows), numerically stable log-softmax.
    # onehot is already zeroed for padded rows, so they contribute nothing.
    m = jnp.max(logits, axis=1, keepdims=True)
    z = logits - m
    lse = jnp.log(jnp.sum(jnp.exp(z), axis=1, keepdims=True))
    logp = z - lse                                           # (B_pad, C)
    picked = jnp.sum(logp * onehot_ref[...], axis=1, keepdims=True)   # (B_pad, 1)
    loss_ref[...] = -(jnp.sum(picked, axis=0, keepdims=True) / B_real)


def segnet_forward(padded_input, input_lengths, target, params):
    """padded_input: (B, T, D) float32 (PyTorch batch_first layout),
       input_lengths: (B,) int32, target: (B,) int32."""
    B, T, D = padded_input.shape
    H = params["whh0T"].shape[0]
    C = params["wfc2T"].shape[1]

    # ---- Pad batch to a full 8-row f32 sublane tile (tile-aligned per-step
    #      slices + full sublane occupancy).  Padded rows: len=0, target=0.
    B_pad = max(8, -(-B // 8) * 8)
    pad = B_pad - B
    x = padded_input.astype(jnp.float32)
    lens = input_lengths.astype(jnp.int32)
    tgt = target.astype(jnp.int32)
    if pad:
        x = jnp.concatenate([x, jnp.zeros((pad, T, D), jnp.float32)], axis=0)
        lens = jnp.concatenate([lens, jnp.zeros((pad,), jnp.int32)])
        tgt = jnp.concatenate([tgt, jnp.zeros((pad,), jnp.int32)])

    # ---- Layout / operand prep (pure XLA plumbing outside the kernel):
    # time-major flatten + bf16 MXU operands (f32 accumulation in-kernel).
    xf = jnp.transpose(x, (1, 0, 2)).reshape(T * B_pad, D).astype(jnp.bfloat16)
    # hoisted packed-sequence validity mask: row t*B_pad + b is 1.0 iff t < len[b]
    t_idx = jnp.arange(T, dtype=jnp.int32).reshape(T, 1)
    valid = (t_idx < lens.reshape(1, B_pad)).astype(jnp.float32).reshape(T * B_pad, 1)
    # "len == T" selector for output[:, -1, :] and pad-excluding one-hot targets.
    last = (lens == T).astype(jnp.float32).reshape(B_pad, 1)
    real = (jnp.arange(B_pad) < B).astype(jnp.float32).reshape(B_pad, 1)
    onehot = jax.nn.one_hot(tgt, C, dtype=jnp.float32) * real

    args = (xf, valid, last, onehot,
            params["wih0T"].astype(jnp.bfloat16),
            params["whh0T"].astype(jnp.bfloat16),
            params["b0"],
            params["w1cat"].astype(jnp.bfloat16),
            params["b1"],
            params["wfc1T"].astype(jnp.bfloat16),
            params["bfc1"],
            params["wfc2T"].astype(jnp.bfloat16),
            params["bfc2"])

    vmem = pltpu.MemorySpace.VMEM
    loss = pl.pallas_call(
        functools.partial(segnet_kernel, T=T, B_pad=B_pad, B_real=B),
        out_shape=jax.ShapeDtypeStruct((1, 1), jnp.float32),
        in_specs=[pl.BlockSpec(memory_space=vmem)] * len(args),
        out_specs=pl.BlockSpec(memory_space=vmem),
        scratch_shapes=[pltpu.VMEM((B_pad, 2 * H), jnp.bfloat16)],
    )(*args)
    return loss[0, 0]


def segnet_reference(padded_input, input_lengths, target, params):
    """Pure-JAX f32 reference with identical semantics (uses the un-fused
    layer-1 weights, so it also checks the in-kernel fusion and the bf16
    operand error)."""
    B, T, D = padded_input.shape
    H = params["whh0T"].shape[0]
    lens = input_lengths.reshape(B, 1)
    h0 = c0 = h1 = c1 = jnp.zeros((B, H), jnp.float32)

    def cell(x_t, h, c, wih, whh, b):
        g = x_t @ wih + h @ whh + b
        i = jax.nn.sigmoid(g[:, :H]); f = jax.nn.sigmoid(g[:, H:2 * H])
        gg = jnp.tanh(g[:, 2 * H:3 * H]); o = jax.nn.sigmoid(g[:, 3 * H:])
        c_new = f * c + i * gg
        return o * jnp.tanh(c_new), c_new

    for t in range(T):
        x_t = padded_input[:, t, :]
        valid = lens > t
        h0n, c0n = cell(x_t, h0, c0, params["wih0T"], params["whh0T"], params["b0"])
        h0 = jnp.where(valid, h0n, h0); c0 = jnp.where(valid, c0n, c0)
        h1n, c1n = cell(h0, h1, c1, params["wih1T"], params["whh1T"], params["b1"])
        h1 = jnp.where(valid, h1n, h1); c1 = jnp.where(valid, c1n, c1)

    out_last = jnp.where(lens == T, h1, 0.0)
    z1 = out_last @ params["wfc1T"] + params["bfc1"]
    a1 = jnp.where(z1 > 0, z1, 0.2 * z1)
    logits = a1 @ params["wfc2T"] + params["bfc2"]
    logp = jax.nn.log_softmax(logits, axis=-1)
    return -jnp.mean(logp[jnp.arange(B), target])


def init_params(key, input_size, hidden_size, fc_hidden, class_num):
    """Deterministic init matching the PyTorch parameter shapes."""
    ks = jax.random.split(key, 16)
    H, D = hidden_size, input_size
    bd = 1.0 / math.sqrt(H)
    u = lambda k, shape, b: jax.random.uniform(k, shape, jnp.float32, -b, b)

    # LSTM layer 0: W_ih (4H, D), W_hh (4H, H), biases (4H,)
    wih0 = u(ks[0], (4 * H, D), bd); whh0 = u(ks[1], (4 * H, H), bd)
    bih0 = u(ks[2], (4 * H,), bd); bhh0 = u(ks[3], (4 * H,), bd)
    # LSTM layer 1: W_ih (4H, H), W_hh (4H, H)
    wih1 = u(ks[4], (4 * H, H), bd); whh1 = u(ks[5], (4 * H, H), bd)
    bih1 = u(ks[6], (4 * H,), bd); bhh1 = u(ks[7], (4 * H,), bd)
    # fc: Linear(H, fc_hidden), Linear(fc_hidden, class_num)
    bf1 = 1.0 / math.sqrt(H)
    wfc1 = u(ks[8], (fc_hidden, H), bf1); bfc1 = u(ks[9], (fc_hidden,), bf1)
    bf2 = 1.0 / math.sqrt(fc_hidden)
    wfc2 = u(ks[10], (class_num, fc_hidden), bf2); bfc2 = u(ks[11], (class_num,), bf2)

    wih1T = wih1.T; whh1T = whh1.T
    return {
        "wih0T": wih0.T, "whh0T": whh0.T, "b0": (bih0 + bhh0).reshape(1, 4 * H),
        "wih1T": wih1T, "whh1T": whh1T,
        # Fused layer-1 weight: [h0, h1] @ [wih1; whh1] == h0@wih1 + h1@whh1.
        "w1cat": jnp.concatenate([wih1T, whh1T], axis=0),
        "b1": (bih1 + bhh1).reshape(1, 4 * H),
        "wfc1T": wfc1.T, "bfc1": bfc1.reshape(1, fc_hidden),
        "wfc2T": wfc2.T, "bfc2": bfc2.reshape(1, class_num),
    }


if __name__ == "__main__":
    # conf-equivalent small shapes
    B, T = 4, 8
    input_size, hidden_size, fc_hidden, class_num = 16, 32, 32, 2

    key = jax.random.PRNGKey(0)
    k_x, k_p = jax.random.split(key)
    padded_input = jax.random.normal(k_x, (B, T, input_size), jnp.float32)
    # pack_padded_sequence default requires lengths sorted descending
    input_lengths = jnp.array([8, 8, 6, 4], dtype=jnp.int32)
    target = jnp.array([0, 1, 1, 0], dtype=jnp.int32)

    params = init_params(k_p, input_size, hidden_size, fc_hidden, class_num)

    loss = segnet_forward(padded_input, input_lengths, target, params)
    jax.block_until_ready(loss)

    ref = segnet_reference(padded_input, input_lengths, target, params)
    jax.block_until_ready(ref)
    assert jnp.allclose(loss, ref, rtol=5e-2, atol=5e-2), (loss, ref)

    print("KERNEL_OK")
</pallas_src>

<mosaic_0001>
module attributes {stable_mosaic.version = 11 : i64} {
  func.func @segnet_kernel(%arg0: memref<64x16xbf16, #tpu.memory_space<vmem>>, %arg1: memref<64x1xf32, #tpu.memory_space<vmem>>, %arg2: memref<8x1xf32, #tpu.memory_space<vmem>>, %arg3: memref<8x2xf32, #tpu.memory_space<vmem>>, %arg4: memref<16x128xbf16, #tpu.memory_space<vmem>>, %arg5: memref<32x128xbf16, #tpu.memory_space<vmem>>, %arg6: memref<1x128xf32, #tpu.memory_space<vmem>>, %arg7: memref<64x128xbf16, #tpu.memory_space<vmem>>, %arg8: memref<1x128xf32, #tpu.memory_space<vmem>>, %arg9: memref<32x32xbf16, #tpu.memory_space<vmem>>, %arg10: memref<1x32xf32, #tpu.memory_space<vmem>>, %arg11: memref<32x2xbf16, #tpu.memory_space<vmem>>, %arg12: memref<1x2xf32, #tpu.memory_space<vmem>>, %arg13: memref<1x1xf32, #tpu.memory_space<vmem>>, %arg14: memref<8x64xbf16, #tpu.memory_space<vmem>>) attributes {dimension_semantics = [], scalar_prefetch = 0 : i64, scratch_operands = 1 : i64, tpu.core_type = #tpu.core_type<tc>} {
    %c0 = arith.constant 0 : index
    %c0_0 = arith.constant 0 : index
    %0 = vector.load %arg0[%c0, %c0_0] : memref<64x16xbf16, #tpu.memory_space<vmem>>, vector<64x16xbf16>
    %c0_1 = arith.constant 0 : index
    %c0_2 = arith.constant 0 : index
    %1 = vector.load %arg4[%c0_1, %c0_2] : memref<16x128xbf16, #tpu.memory_space<vmem>>, vector<16x128xbf16>
    %cst = arith.constant dense<0.000000e+00> : vector<64x128xf32>
    %2 = tpu.matmul %0, %1, %cst {dimension_numbers = #tpu.dot_dimension_numbers<[1], [0], [0], [1], [0, 0, 1, 1], [], []>} : vector<64x16xbf16>, vector<16x128xbf16>, vector<64x128xf32> -> vector<64x128xf32>
    %c0_3 = arith.constant 0 : index
    %c0_4 = arith.constant 0 : index
    %3 = vector.load %arg6[%c0_3, %c0_4] : memref<1x128xf32, #tpu.memory_space<vmem>>, vector<1x128xf32>
    %4 = vector.broadcast %3 : vector<1x128xf32> to vector<64x128xf32>
    %5 = arith.addf %2, %4 : vector<64x128xf32>
    %c0_5 = arith.constant 0 : index
    %c0_6 = arith.constant 0 : index
    %6 = vector.load %arg5[%c0_5, %c0_6] : memref<32x128xbf16, #tpu.memory_space<vmem>>, vector<32x128xbf16>
    %c0_7 = arith.constant 0 : index
    %c0_8 = arith.constant 0 : index
    %7 = vector.load %arg7[%c0_7, %c0_8] : memref<64x128xbf16, #tpu.memory_space<vmem>>, vector<64x128xbf16>
    %c0_9 = arith.constant 0 : index
    %c0_10 = arith.constant 0 : index
    %8 = vector.load %arg8[%c0_9, %c0_10] : memref<1x128xf32, #tpu.memory_space<vmem>>, vector<1x128xf32>
    %9 = vector.shape_cast %8 : vector<1x128xf32> to vector<1x128xf32>
    %10 = vector.broadcast %9 : vector<1x128xf32> to vector<8x128xf32>
    %c0_11 = arith.constant 0 : index
    %c0_12 = arith.constant 0 : index
    %11 = vector.load %arg1[%c0_11, %c0_12] : memref<64x1xf32, #tpu.memory_space<vmem>>, vector<64x1xf32>
    %cst_13 = arith.constant 0.000000e+00 : bf16
    %12 = vector.broadcast %cst_13 : bf16 to vector<8x64xbf16>
    %c0_14 = arith.constant 0 : index
    %c0_15 = arith.constant 0 : index
    %13 = vector.load %arg14[%c0_14, %c0_15] : memref<8x64xbf16, #tpu.memory_space<vmem>>, vector<8x64xbf16>
    tpu.vector_store %arg14[%c0_14, %c0_15], %12 {strides = array<i32>} : memref<8x64xbf16, #tpu.memory_space<vmem>>, vector<8x64xbf16>,
    %cst_16 = arith.constant 0.000000e+00 : f32
    %14 = vector.broadcast %cst_16 : f32 to vector<8x32xf32>
    %15 = vector.extract_strided_slice %11 {offsets = [0, 0], sizes = [8, 1], strides = [1, 1]} : vector<64x1xf32> to vector<8x1xf32>
    %16 = vector.extract_strided_slice %5 {offsets = [0, 0], sizes = [8, 128], strides = [1, 1]} : vector<64x128xf32> to vector<8x128xf32>
    %c0_17 = arith.constant 0 : index
    %c0_18 = arith.constant 0 : index
    %17 = vector.load %arg14[%c0_17, %c0_18] : memref<8x64xbf16, #tpu.memory_space<vmem>>, vector<8x32xbf16>
    %cst_19 = arith.constant dense<0.000000e+00> : vector<8x128xf32>
    %18 = tpu.matmul %17, %6, %cst_19 {dimension_numbers = #tpu.dot_dimension_numbers<[1], [0], [0], [1], [0, 0, 1, 1], [], []>} : vector<8x32xbf16>, vector<32x128xbf16>, vector<8x128xf32> -> vector<8x128xf32>
    %19 = arith.addf %16, %18 : vector<8x128xf32>
    %20 = arith.negf %19 : vector<8x128xf32>
    %21 = math.exp %20 : vector<8x128xf32>
    %cst_20 = arith.constant 1.000000e+00 : f32
    %22 = vector.broadcast %cst_20 : f32 to vector<8x128xf32>
    %23 = arith.addf %22, %21 : vector<8x128xf32>
    %24 = arith.divf %22, %23 : vector<8x128xf32>
    %25 = vector.extract_strided_slice %24 {offsets = [0, 0], sizes = [8, 32], strides = [1, 1]} : vector<8x128xf32> to vector<8x32xf32>
    %26 = vector.extract_strided_slice %24 {offsets = [0, 32], sizes = [8, 32], strides = [1, 1]} : vector<8x128xf32> to vector<8x32xf32>
    %27 = vector.extract_strided_slice %24 {offsets = [0, 96], sizes = [8, 32], strides = [1, 1]} : vector<8x128xf32> to vector<8x32xf32>
    %28 = vector.extract_strided_slice %19 {offsets = [0, 64], sizes = [8, 32], strides = [1, 1]} : vector<8x128xf32> to vector<8x32xf32>
    %29 = math.tanh %28 : vector<8x32xf32>
    %30 = arith.mulf %26, %14 : vector<8x32xf32>
    %31 = arith.mulf %25, %29 : vector<8x32xf32>
    %32 = arith.addf %30, %31 : vector<8x32xf32>
    %33 = math.tanh %32 : vector<8x32xf32>
    %34 = arith.mulf %27, %33 : vector<8x32xf32>
    %35 = arith.subf %34, %14 : vector<8x32xf32>
    %36 = vector.broadcast %15 : vector<8x1xf32> to vector<8x32xf32>
    %37 = arith.mulf %36, %35 : vector<8x32xf32>
    %38 = arith.addf %14, %37 : vector<8x32xf32>
    %39 = arith.subf %32, %14 : vector<8x32xf32>
    %40 = vector.broadcast %15 : vector<8x1xf32> to vector<8x32xf32>
    %41 = arith.mulf %40, %39 : vector<8x32xf32>
    %42 = arith.addf %14, %41 : vector<8x32xf32>
    %43 = arith.truncf %38 : vector<8x32xf32> to vector<8x32xbf16>
    %c0_21 = arith.constant 0 : index
    %c0_22 = arith.constant 0 : index
    %44 = vector.load %arg14[%c0_21, %c0_22] : memref<8x64xbf16, #tpu.memory_space<vmem>>, vector<8x32xbf16>
    tpu.vector_store %arg14[%c0_21, %c0_22], %43 {strides = array<i32>} : memref<8x64xbf16, #tpu.memory_space<vmem>>, vector<8x32xbf16>,
    %c0_23 = arith.constant 0 : index
    %c0_24 = arith.constant 0 : index
    %45 = vector.load %arg14[%c0_23, %c0_24] : memref<8x64xbf16, #tpu.memory_space<vmem>>, vector<8x64xbf16>
    %cst_25 = arith.constant dense<0.000000e+00> : vector<8x128xf32>
    %46 = tpu.matmul %45, %7, %cst_25 {dimension_numbers = #tpu.dot_dimension_numbers<[1], [0], [0], [1], [0, 0, 1, 1], [], []>} : vector<8x64xbf16>, vector<64x128xbf16>, vector<8x128xf32> -> vector<8x128xf32>
    %47 = arith.addf %46, %10 : vector<8x128xf32>
    %48 = arith.negf %47 : vector<8x128xf32>
    %49 = math.exp %48 : vector<8x128xf32>
    %cst_26 = arith.constant 1.000000e+00 : f32
    %50 = vector.broadcast %cst_26 : f32 to vector<8x128xf32>
    %51 = arith.addf %50, %49 : vector<8x128xf32>
    %52 = arith.divf %50, %51 : vector<8x128xf32>
    %53 = vector.extract_strided_slice %52 {offsets = [0, 0], sizes = [8, 32], strides = [1, 1]} : vector<8x128xf32> to vector<8x32xf32>
    %54 = vector.extract_strided_slice %52 {offsets = [0, 32], sizes = [8, 32], strides = [1, 1]} : vector<8x128xf32> to vector<8x32xf32>
    %55 = vector.extract_strided_slice %52 {offsets = [0, 96], sizes = [8, 32], strides = [1, 1]} : vector<8x128xf32> to vector<8x32xf32>
    %56 = vector.extract_strided_slice %47 {offsets = [0, 64], sizes = [8, 32], strides = [1, 1]} : vector<8x128xf32> to vector<8x32xf32>
    %57 = math.tanh %56 : vector<8x32xf32>
    %58 = arith.mulf %54, %14 : vector<8x32xf32>
    %59 = arith.mulf %53, %57 : vector<8x32xf32>
    %60 = arith.addf %58, %59 : vector<8x32xf32>
    %61 = math.tanh %60 : vector<8x32xf32>
    %62 = arith.mulf %55, %61 : vector<8x32xf32>
    %63 = arith.subf %62, %14 : vector<8x32xf32>
    %64 = vector.broadcast %15 : vector<8x1xf32> to vector<8x32xf32>
    %65 = arith.mulf %64, %63 : vector<8x32xf32>
    %66 = arith.addf %14, %65 : vector<8x32xf32>
    %67 = arith.subf %60, %14 : vector<8x32xf32>
    %68 = vector.broadcast %15 : vector<8x1xf32> to vector<8x32xf32>
    %69 = arith.mulf %68, %67 : vector<8x32xf32>
    %70 = arith.addf %14, %69 : vector<8x32xf32>
    %71 = arith.truncf %66 : vector<8x32xf32> to vector<8x32xbf16>
    %c0_27 = arith.constant 0 : index
    %c32 = arith.constant 32 : index
    %72 = vector.load %arg14[%c0_27, %c32] : memref<8x64xbf16, #tpu.memory_space<vmem>>, vector<8x32xbf16>
    tpu.vector_store %arg14[%c0_27, %c32], %71 {strides = array<i32>} : memref<8x64xbf16, #tpu.memory_space<vmem>>, vector<8x32xbf16>,
    %73 = vector.extract_strided_slice %11 {offsets = [8, 0], sizes = [8, 1], strides = [1, 1]} : vector<64x1xf32> to vector<8x1xf32>
    %74 = vector.extract_strided_slice %5 {offsets = [8, 0], sizes = [8, 128], strides = [1, 1]} : vector<64x128xf32> to vector<8x128xf32>
    %c0_28 = arith.constant 0 : index
    %c0_29 = arith.constant 0 : index
    %75 = vector.load %arg14[%c0_28, %c0_29] : memref<8x64xbf16, #tpu.memory_space<vmem>>, vector<8x32xbf16>
    %cst_30 = arith.constant dense<0.000000e+00> : vector<8x128xf32>
    %76 = tpu.matmul %75, %6, %cst_30 {dimension_numbers = #tpu.dot_dimension_numbers<[1], [0], [0], [1], [0, 0, 1, 1], [], []>} : vector<8x32xbf16>, vector<32x128xbf16>, vector<8x128xf32> -> vector<8x128xf32>
    %77 = arith.addf %74, %76 : vector<8x128xf32>
    %78 = arith.negf %77 : vector<8x128xf32>
    %79 = math.exp %78 : vector<8x128xf32>
    %cst_31 = arith.constant 1.000000e+00 : f32
    %80 = vector.broadcast %cst_31 : f32 to vector<8x128xf32>
    %81 = arith.addf %80, %79 : vector<8x128xf32>
    %82 = arith.divf %80, %81 : vector<8x128xf32>
    %83 = vector.extract_strided_slice %82 {offsets = [0, 0], sizes = [8, 32], strides = [1, 1]} : vector<8x128xf32> to vector<8x32xf32>
    %84 = vector.extract_strided_slice %82 {offsets = [0, 32], sizes = [8, 32], strides = [1, 1]} : vector<8x128xf32> to vector<8x32xf32>
    %85 = vector.extract_strided_slice %82 {offsets = [0, 96], sizes = [8, 32], strides = [1, 1]} : vector<8x128xf32> to vector<8x32xf32>
    %86 = vector.extract_strided_slice %77 {offsets = [0, 64], sizes = [8, 32], strides = [1, 1]} : vector<8x128xf32> to vector<8x32xf32>
    %87 = math.tanh %86 : vector<8x32xf32>
    %88 = arith.mulf %84, %42 : vector<8x32xf32>
    %89 = arith.mulf %83, %87 : vector<8x32xf32>
    %90 = arith.addf %88, %89 : vector<8x32xf32>
    %91 = math.tanh %90 : vector<8x32xf32>
    %92 = arith.mulf %85, %91 : vector<8x32xf32>
    %93 = arith.subf %92, %38 : vector<8x32xf32>
    %94 = vector.broadcast %73 : vector<8x1xf32> to vector<8x32xf32>
    %95 = arith.mulf %94, %93 : vector<8x32xf32>
    %96 = arith.addf %38, %95 : vector<8x32xf32>
    %97 = arith.subf %90, %42 : vector<8x32xf32>
    %98 = vector.broadcast %73 : vector<8x1xf32> to vector<8x32xf32>
    %99 = arith.mulf %98, %97 : vector<8x32xf32>
    %100 = arith.addf %42, %99 : vector<8x32xf32>
    %101 = arith.truncf %96 : vector<8x32xf32> to vector<8x32xbf16>
    %c0_32 = arith.constant 0 : index
    %c0_33 = arith.constant 0 : index
    %102 = vector.load %arg14[%c0_32, %c0_33] : memref<8x64xbf16, #tpu.memory_space<vmem>>, vector<8x32xbf16>
    tpu.vector_store %arg14[%c0_32, %c0_33], %101 {strides = array<i32>} : memref<8x64xbf16, #tpu.memory_space<vmem>>, vector<8x32xbf16>,
    %c0_34 = arith.constant 0 : index
    %c0_35 = arith.constant 0 : index
    %103 = vector.load %arg14[%c0_34, %c0_35] : memref<8x64xbf16, #tpu.memory_space<vmem>>, vector<8x64xbf16>
    %cst_36 = arith.constant dense<0.000000e+00> : vector<8x128xf32>
    %104 = tpu.matmul %103, %7, %cst_36 {dimension_numbers = #tpu.dot_dimension_numbers<[1], [0], [0], [1], [0, 0, 1, 1], [], []>} : vector<8x64xbf16>, vector<64x128xbf16>, vector<8x128xf32> -> vector<8x128xf32>
    %105 = arith.addf %104, %10 : vector<8x128xf32>
    %106 = arith.negf %105 : vector<8x128xf32>
    %107 = math.exp %106 : vector<8x128xf32>
    %cst_37 = arith.constant 1.000000e+00 : f32
    %108 = vector.broadcast %cst_37 : f32 to vector<8x128xf32>
    %109 = arith.addf %108, %107 : vector<8x128xf32>
    %110 = arith.divf %108, %109 : vector<8x128xf32>
    %111 = vector.extract_strided_slice %110 {offsets = [0, 0], sizes = [8, 32], strides = [1, 1]} : vector<8x128xf32> to vector<8x32xf32>
    %112 = vector.extract_strided_slice %110 {offsets = [0, 32], sizes = [8, 32], strides = [1, 1]} : vector<8x128xf32> to vector<8x32xf32>
    %113 = vector.extract_strided_slice %110 {offsets = [0, 96], sizes = [8, 32], strides = [1, 1]} : vector<8x128xf32> to vector<8x32xf32>
    %114 = vector.extract_strided_slice %105 {offsets = [0, 64], sizes = [8, 32], strides = [1, 1]} : vector<8x128xf32> to vector<8x32xf32>
    %115 = math.tanh %114 : vector<8x32xf32>
    %116 = arith.mulf %112, %70 : vector<8x32xf32>
    %117 = arith.mulf %111, %115 : vector<8x32xf32>
    %118 = arith.addf %116, %117 : vector<8x32xf32>
    %119 = math.tanh %118 : vector<8x32xf32>
    %120 = arith.mulf %113, %119 : vector<8x32xf32>
    %121 = arith.subf %120, %66 : vector<8x32xf32>
    %122 = vector.broadcast %73 : vector<8x1xf32> to vector<8x32xf32>
    %123 = arith.mulf %122, %121 : vector<8x32xf32>
    %124 = arith.addf %66, %123 : vector<8x32xf32>
    %125 = arith.subf %118, %70 : vector<8x32xf32>
    %126 = vector.broadcast %73 : vector<8x1xf32> to vector<8x32xf32>
    %127 = arith.mulf %126, %125 : vector<8x32xf32>
    %128 = arith.addf %70, %127 : vector<8x32xf32>
    %129 = arith.truncf %124 : vector<8x32xf32> to vector<8x32xbf16>
    %c0_38 = arith.constant 0 : index
    %c32_39 = arith.constant 32 : index
    %130 = vector.load %arg14[%c0_38, %c32_39] : memref<8x64xbf16, #tpu.memory_space<vmem>>, vector<8x32xbf16>
    tpu.vector_store %arg14[%c0_38, %c32_39], %129 {strides = array<i32>} : memref<8x64xbf16, #tpu.memory_space<vmem>>, vector<8x32xbf16>,
    %131 = vector.extract_strided_slice %11 {offsets = [16, 0], sizes = [8, 1], strides = [1, 1]} : vector<64x1xf32> to vector<8x1xf32>
    %132 = vector.extract_strided_slice %5 {offsets = [16, 0], sizes = [8, 128], strides = [1, 1]} : vector<64x128xf32> to vector<8x128xf32>
    %c0_40 = arith.constant 0 : index
    %c0_41 = arith.constant 0 : index
    %133 = vector.load %arg14[%c0_40, %c0_41] : memref<8x64xbf16, #tpu.memory_space<vmem>>, vector<8x32xbf16>
    %cst_42 = arith.constant dense<0.000000e+00> : vector<8x128xf32>
    %134 = tpu.matmul %133, %6, %cst_42 {dimension_numbers = #tpu.dot_dimension_numbers<[1], [0], [0], [1], [0, 0, 1, 1], [], []>} : vector<8x32xbf16>, vector<32x128xbf16>, vector<8x128xf32> -> vector<8x128xf32>
    %135 = arith.addf %132, %134 : vector<8x128xf32>
    %136 = arith.negf %135 : vector<8x128xf32>
    %137 = math.exp %136 : vector<8x128xf32>
    %cst_43 = arith.constant 1.000000e+00 : f32
    %138 = vector.broadcast %cst_43 : f32 to vector<8x128xf32>
    %139 = arith.addf %138, %137 : vector<8x128xf32>
    %140 = arith.divf %138, %139 : vector<8x128xf32>
    %141 = vector.extract_strided_slice %140 {offsets = [0, 0], sizes = [8, 32], strides = [1, 1]} : vector<8x128xf32> to vector<8x32xf32>
    %142 = vector.extract_strided_slice %140 {offsets = [0, 32], sizes = [8, 32], strides = [1, 1]} : vector<8x128xf32> to vector<8x32xf32>
    %143 = vector.extract_strided_slice %140 {offsets = [0, 96], sizes = [8, 32], strides = [1, 1]} : vector<8x128xf32> to vector<8x32xf32>
    %144 = vector.extract_strided_slice %135 {offsets = [0, 64], sizes = [8, 32], strides = [1, 1]} : vector<8x128xf32> to vector<8x32xf32>
    %145 = math.tanh %144 : vector<8x32xf32>
    %146 = arith.mulf %142, %100 : vector<8x32xf32>
    %147 = arith.mulf %141, %145 : vector<8x32xf32>
    %148 = arith.addf %146, %147 : vector<8x32xf32>
    %149 = math.tanh %148 : vector<8x32xf32>
    %150 = arith.mulf %143, %149 : vector<8x32xf32>
    %151 = arith.subf %150, %96 : vector<8x32xf32>
    %152 = vector.broadcast %131 : vector<8x1xf32> to vector<8x32xf32>
    %153 = arith.mulf %152, %151 : vector<8x32xf32>
    %154 = arith.addf %96, %153 : vector<8x32xf32>
    %155 = arith.subf %148, %100 : vector<8x32xf32>
    %156 = vector.broadcast %131 : vector<8x1xf32> to vector<8x32xf32>
    %157 = arith.mulf %156, %155 : vector<8x32xf32>
    %158 = arith.addf %100, %157 : vector<8x32xf32>
    %159 = arith.truncf %154 : vector<8x32xf32> to vector<8x32xbf16>
    %c0_44 = arith.constant 0 : index
    %c0_45 = arith.constant 0 : index
    %160 = vector.load %arg14[%c0_44, %c0_45] : memref<8x64xbf16, #tpu.memory_space<vmem>>, vector<8x32xbf16>
    tpu.vector_store %arg14[%c0_44, %c0_45], %159 {strides = array<i32>} : memref<8x64xbf16, #tpu.memory_space<vmem>>, vector<8x32xbf16>,
    %c0_46 = arith.constant 0 : index
    %c0_47 = arith.constant 0 : index
    %161 = vector.load %arg14[%c0_46, %c0_47] : memref<8x64xbf16, #tpu.memory_space<vmem>>, vector<8x64xbf16>
    %cst_48 = arith.constant dense<0.000000e+00> : vector<8x128xf32>
    %162 = tpu.matmul %161, %7, %cst_48 {dimension_numbers = #tpu.dot_dimension_numbers<[1], [0], [0], [1], [0, 0, 1, 1], [], []>} : vector<8x64xbf16>, vector<64x128xbf16>, vector<8x128xf32> -> vector<8x128xf32>
    %163 = arith.addf %162, %10 : vector<8x128xf32>
    %164 = arith.negf %163 : vector<8x128xf32>
    %165 = math.exp %164 : vector<8x128xf32>
    %cst_49 = arith.constant 1.000000e+00 : f32
    %166 = vector.broadcast %cst_49 : f32 to vector<8x128xf32>
    %167 = arith.addf %166, %165 : vector<8x128xf32>
    %168 = arith.divf %166, %167 : vector<8x128xf32>
    %169 = vector.extract_strided_slice %168 {offsets = [0, 0], sizes = [8, 32], strides = [1, 1]} : vector<8x128xf32> to vector<8x32xf32>
    %170 = vector.extract_strided_slice %168 {offsets = [0, 32], sizes = [8, 32], strides = [1, 1]} : vector<8x128xf32> to vector<8x32xf32>
    %171 = vector.extract_strided_slice %168 {offsets = [0, 96], sizes = [8, 32], strides = [1, 1]} : vector<8x128xf32> to vector<8x32xf32>
    %172 = vector.extract_strided_slice %163 {offsets = [0, 64], sizes = [8, 32], strides = [1, 1]} : vector<8x128xf32> to vector<8x32xf32>
    %173 = math.tanh %172 : vector<8x32xf32>
    %174 = arith.mulf %170, %128 : vector<8x32xf32>
    %175 = arith.mulf %169, %173 : vector<8x32xf32>
    %176 = arith.addf %174, %175 : vector<8x32xf32>
    %177 = math.tanh %176 : vector<8x32xf32>
    %178 = arith.mulf %171, %177 : vector<8x32xf32>
    %179 = arith.subf %178, %124 : vector<8x32xf32>
    %180 = vector.broadcast %131 : vector<8x1xf32> to vector<8x32xf32>
    %181 = arith.mulf %180, %179 : vector<8x32xf32>
    %182 = arith.addf %124, %181 : vector<8x32xf32>
    %183 = arith.subf %176, %128 : vector<8x32xf32>
    %184 = vector.broadcast %131 : vector<8x1xf32> to vector<8x32xf32>
    %185 = arith.mulf %184, %183 : vector<8x32xf32>
    %186 = arith.addf %128, %185 : vector<8x32xf32>
    %187 = arith.truncf %182 : vector<8x32xf32> to vector<8x32xbf16>
    %c0_50 = arith.constant 0 : index
    %c32_51 = arith.constant 32 : index
    %188 = vector.load %arg14[%c0_50, %c32_51] : memref<8x64xbf16, #tpu.memory_space<vmem>>, vector<8x32xbf16>
    tpu.vector_store %arg14[%c0_50, %c32_51], %187 {strides = array<i32>} : memref<8x64xbf16, #tpu.memory_space<vmem>>, vector<8x32xbf16>,
    %189 = vector.extract_strided_slice %11 {offsets = [24, 0], sizes = [8, 1], strides = [1, 1]} : vector<64x1xf32> to vector<8x1xf32>
    %190 = vector.extract_strided_slice %5 {offsets = [24, 0], sizes = [8, 128], strides = [1, 1]} : vector<64x128xf32> to vector<8x128xf32>
    %c0_52 = arith.constant 0 : index
    %c0_53 = arith.constant 0 : index
    %191 = vector.load %arg14[%c0_52, %c0_53] : memref<8x64xbf16, #tpu.memory_space<vmem>>, vector<8x32xbf16>
    %cst_54 = arith.constant dense<0.000000e+00> : vector<8x128xf32>
    %192 = tpu.matmul %191, %6, %cst_54 {dimension_numbers = #tpu.dot_dimension_numbers<[1], [0], [0], [1], [0, 0, 1, 1], [], []>} : vector<8x32xbf16>, vector<32x128xbf16>, vector<8x128xf32> -> vector<8x128xf32>
    %193 = arith.addf %190, %192 : vector<8x128xf32>
    %194 = arith.negf %193 : vector<8x128xf32>
    %195 = math.exp %194 : vector<8x128xf32>
    %cst_55 = arith.constant 1.000000e+00 : f32
    %196 = vector.broadcast %cst_55 : f32 to vector<8x128xf32>
    %197 = arith.addf %196, %195 : vector<8x128xf32>
    %198 = arith.divf %196, %197 : vector<8x128xf32>
    %199 = vector.extract_strided_slice %198 {offsets = [0, 0], sizes = [8, 32], strides = [1, 1]} : vector<8x128xf32> to vector<8x32xf32>
    %200 = vector.extract_strided_slice %198 {offsets = [0, 32], sizes = [8, 32], strides = [1, 1]} : vector<8x128xf32> to vector<8x32xf32>
    %201 = vector.extract_strided_slice %198 {offsets = [0, 96], sizes = [8, 32], strides = [1, 1]} : vector<8x128xf32> to vector<8x32xf32>
    %202 = vector.extract_strided_slice %193 {offsets = [0, 64], sizes = [8, 32], strides = [1, 1]} : vector<8x128xf32> to vector<8x32xf32>
    %203 = math.tanh %202 : vector<8x32xf32>
    %204 = arith.mulf %200, %158 : vector<8x32xf32>
    %205 = arith.mulf %199, %203 : vector<8x32xf32>
    %206 = arith.addf %204, %205 : vector<8x32xf32>
    %207 = math.tanh %206 : vector<8x32xf32>
    %208 = arith.mulf %201, %207 : vector<8x32xf32>
    %209 = arith.subf %208, %154 : vector<8x32xf32>
    %210 = vector.broadcast %189 : vector<8x1xf32> to vector<8x32xf32>
    %211 = arith.mulf %210, %209 : vector<8x32xf32>
    %212 = arith.addf %154, %211 : vector<8x32xf32>
    %213 = arith.subf %206, %158 : vector<8x32xf32>
    %214 = vector.broadcast %189 : vector<8x1xf32> to vector<8x32xf32>
    %215 = arith.mulf %214, %213 : vector<8x32xf32>
    %216 = arith.addf %158, %215 : vector<8x32xf32>
    %217 = arith.truncf %212 : vector<8x32xf32> to vector<8x32xbf16>
    %c0_56 = arith.constant 0 : index
    %c0_57 = arith.constant 0 : index
    %218 = vector.load %arg14[%c0_56, %c0_57] : memref<8x64xbf16, #tpu.memory_space<vmem>>, vector<8x32xbf16>
    tpu.vector_store %arg14[%c0_56, %c0_57], %217 {strides = array<i32>} : memref<8x64xbf16, #tpu.memory_space<vmem>>, vector<8x32xbf16>,
    %c0_58 = arith.constant 0 : index
    %c0_59 = arith.constant 0 : index
    %219 = vector.load %arg14[%c0_58, %c0_59] : memref<8x64xbf16, #tpu.memory_space<vmem>>, vector<8x64xbf16>
    %cst_60 = arith.constant dense<0.000000e+00> : vector<8x128xf32>
    %220 = tpu.matmul %219, %7, %cst_60 {dimension_numbers = #tpu.dot_dimension_numbers<[1], [0], [0], [1], [0, 0, 1, 1], [], []>} : vector<8x64xbf16>, vector<64x128xbf16>, vector<8x128xf32> -> vector<8x128xf32>
    %221 = arith.addf %220, %10 : vector<8x128xf32>
    %222 = arith.negf %221 : vector<8x128xf32>
    %223 = math.exp %222 : vector<8x128xf32>
    %cst_61 = arith.constant 1.000000e+00 : f32
    %224 = vector.broadcast %cst_61 : f32 to vector<8x128xf32>
    %225 = arith.addf %224, %223 : vector<8x128xf32>
    %226 = arith.divf %224, %225 : vector<8x128xf32>
    %227 = vector.extract_strided_slice %226 {offsets = [0, 0], sizes = [8, 32], strides = [1, 1]} : vector<8x128xf32> to vector<8x32xf32>
    %228 = vector.extract_strided_slice %226 {offsets = [0, 32], sizes = [8, 32], strides = [1, 1]} : vector<8x128xf32> to vector<8x32xf32>
    %229 = vector.extract_strided_slice %226 {offsets = [0, 96], sizes = [8, 32], strides = [1, 1]} : vector<8x128xf32> to vector<8x32xf32>
    %230 = vector.extract_strided_slice %221 {offsets = [0, 64], sizes = [8, 32], strides = [1, 1]} : vector<8x128xf32> to vector<8x32xf32>
    %231 = math.tanh %230 : vector<8x32xf32>
    %232 = arith.mulf %228, %186 : vector<8x32xf32>
    %233 = arith.mulf %227, %231 : vector<8x32xf32>
    %234 = arith.addf %232, %233 : vector<8x32xf32>
    %235 = math.tanh %234 : vector<8x32xf32>
    %236 = arith.mulf %229, %235 : vector<8x32xf32>
    %237 = arith.subf %236, %182 : vector<8x32xf32>
    %238 = vector.broadcast %189 : vector<8x1xf32> to vector<8x32xf32>
    %239 = arith.mulf %238, %237 : vector<8x32xf32>
    %240 = arith.addf %182, %239 : vector<8x32xf32>
    %241 = arith.subf %234, %186 : vector<8x32xf32>
    %242 = vector.broadcast %189 : vector<8x1xf32> to vector<8x32xf32>
    %243 = arith.mulf %242, %241 : vector<8x32xf32>
    %244 = arith.addf %186, %243 : vector<8x32xf32>
    %245 = arith.truncf %240 : vector<8x32xf32> to vector<8x32xbf16>
    %c0_62 = arith.constant 0 : index
    %c32_63 = arith.constant 32 : index
    %246 = vector.load %arg14[%c0_62, %c32_63] : memref<8x64xbf16, #tpu.memory_space<vmem>>, vector<8x32xbf16>
    tpu.vector_store %arg14[%c0_62, %c32_63], %245 {strides = array<i32>} : memref<8x64xbf16, #tpu.memory_space<vmem>>, vector<8x32xbf16>,
    %247 = vector.extract_strided_slice %11 {offsets = [32, 0], sizes = [8, 1], strides = [1, 1]} : vector<64x1xf32> to vector<8x1xf32>
    %248 = vector.extract_strided_slice %5 {offsets = [32, 0], sizes = [8, 128], strides = [1, 1]} : vector<64x128xf32> to vector<8x128xf32>
    %c0_64 = arith.constant 0 : index
    %c0_65 = arith.constant 0 : index
    %249 = vector.load %arg14[%c0_64, %c0_65] : memref<8x64xbf16, #tpu.memory_space<vmem>>, vector<8x32xbf16>
    %cst_66 = arith.constant dense<0.000000e+00> : vector<8x128xf32>
    %250 = tpu.matmul %249, %6, %cst_66 {dimension_numbers = #tpu.dot_dimension_numbers<[1], [0], [0], [1], [0, 0, 1, 1], [], []>} : vector<8x32xbf16>, vector<32x128xbf16>, vector<8x128xf32> -> vector<8x128xf32>
    %251 = arith.addf %248, %250 : vector<8x128xf32>
    %252 = arith.negf %251 : vector<8x128xf32>
    %253 = math.exp %252 : vector<8x128xf32>
    %cst_67 = arith.constant 1.000000e+00 : f32
    %254 = vector.broadcast %cst_67 : f32 to vector<8x128xf32>
    %255 = arith.addf %254, %253 : vector<8x128xf32>
    %256 = arith.divf %254, %255 : vector<8x128xf32>
    %257 = vector.extract_strided_slice %256 {offsets = [0, 0], sizes = [8, 32], strides = [1, 1]} : vector<8x128xf32> to vector<8x32xf32>
    %258 = vector.extract_strided_slice %256 {offsets = [0, 32], sizes = [8, 32], strides = [1, 1]} : vector<8x128xf32> to vector<8x32xf32>
    %259 = vector.extract_strided_slice %256 {offsets = [0, 96], sizes = [8, 32], strides = [1, 1]} : vector<8x128xf32> to vector<8x32xf32>
    %260 = vector.extract_strided_slice %251 {offsets = [0, 64], sizes = [8, 32], strides = [1, 1]} : vector<8x128xf32> to vector<8x32xf32>
    %261 = math.tanh %260 : vector<8x32xf32>
    %262 = arith.mulf %258, %216 : vector<8x32xf32>
    %263 = arith.mulf %257, %261 : vector<8x32xf32>
    %264 = arith.addf %262, %263 : vector<8x32xf32>
    %265 = math.tanh %264 : vector<8x32xf32>
    %266 = arith.mulf %259, %265 : vector<8x32xf32>
    %267 = arith.subf %266, %212 : vector<8x32xf32>
    %268 = vector.broadcast %247 : vector<8x1xf32> to vector<8x32xf32>
    %269 = arith.mulf %268, %267 : vector<8x32xf32>
    %270 = arith.addf %212, %269 : vector<8x32xf32>
    %271 = arith.subf %264, %216 : vector<8x32xf32>
    %272 = vector.broadcast %247 : vector<8x1xf32> to vector<8x32xf32>
    %273 = arith.mulf %272, %271 : vector<8x32xf32>
    %274 = arith.addf %216, %273 : vector<8x32xf32>
    %275 = arith.truncf %270 : vector<8x32xf32> to vector<8x32xbf16>
    %c0_68 = arith.constant 0 : index
    %c0_69 = arith.constant 0 : index
    %276 = vector.load %arg14[%c0_68, %c0_69] : memref<8x64xbf16, #tpu.memory_space<vmem>>, vector<8x32xbf16>
    tpu.vector_store %arg14[%c0_68, %c0_69], %275 {strides = array<i32>} : memref<8x64xbf16, #tpu.memory_space<vmem>>, vector<8x32xbf16>,
    %c0_70 = arith.constant 0 : index
    %c0_71 = arith.constant 0 : index
    %277 = vector.load %arg14[%c0_70, %c0_71] : memref<8x64xbf16, #tpu.memory_space<vmem>>, vector<8x64xbf16>
    %cst_72 = arith.constant dense<0.000000e+00> : vector<8x128xf32>
    %278 = tpu.matmul %277, %7, %cst_72 {dimension_numbers = #tpu.dot_dimension_numbers<[1], [0], [0], [1], [0, 0, 1, 1], [], []>} : vector<8x64xbf16>, vector<64x128xbf16>, vector<8x128xf32> -> vector<8x128xf32>
    %279 = arith.addf %278, %10 : vector<8x128xf32>
    %280 = arith.negf %279 : vector<8x128xf32>
    %281 = math.exp %280 : vector<8x128xf32>
    %cst_73 = arith.constant 1.000000e+00 : f32
    %282 = vector.broadcast %cst_73 : f32 to vector<8x128xf32>
    %283 = arith.addf %282, %281 : vector<8x128xf32>
    %284 = arith.divf %282, %283 : vector<8x128xf32>
    %285 = vector.extract_strided_slice %284 {offsets = [0, 0], sizes = [8, 32], strides = [1, 1]} : vector<8x128xf32> to vector<8x32xf32>
    %286 = vector.extract_strided_slice %284 {offsets = [0, 32], sizes = [8, 32], strides = [1, 1]} : vector<8x128xf32> to vector<8x32xf32>
    %287 = vector.extract_strided_slice %284 {offsets = [0, 96], sizes = [8, 32], strides = [1, 1]} : vector<8x128xf32> to vector<8x32xf32>
    %288 = vector.extract_strided_slice %279 {offsets = [0, 64], sizes = [8, 32], strides = [1, 1]} : vector<8x128xf32> to vector<8x32xf32>
    %289 = math.tanh %288 : vector<8x32xf32>
    %290 = arith.mulf %286, %244 : vector<8x32xf32>
    %291 = arith.mulf %285, %289 : vector<8x32xf32>
    %292 = arith.addf %290, %291 : vector<8x32xf32>
    %293 = math.tanh %292 : vector<8x32xf32>
    %294 = arith.mulf %287, %293 : vector<8x32xf32>
    %295 = arith.subf %294, %240 : vector<8x32xf32>
    %296 = vector.broadcast %247 : vector<8x1xf32> to vector<8x32xf32>
    %297 = arith.mulf %296, %295 : vector<8x32xf32>
    %298 = arith.addf %240, %297 : vector<8x32xf32>
    %299 = arith.subf %292, %244 : vector<8x32xf32>
    %300 = vector.broadcast %247 : vector<8x1xf32> to vector<8x32xf32>
    %301 = arith.mulf %300, %299 : vector<8x32xf32>
    %302 = arith.addf %244, %301 : vector<8x32xf32>
    %303 = arith.truncf %298 : vector<8x32xf32> to vector<8x32xbf16>
    %c0_74 = arith.constant 0 : index
    %c32_75 = arith.constant 32 : index
    %304 = vector.load %arg14[%c0_74, %c32_75] : memref<8x64xbf16, #tpu.memory_space<vmem>>, vector<8x32xbf16>
    tpu.vector_store %arg14[%c0_74, %c32_75], %303 {strides = array<i32>} : memref<8x64xbf16, #tpu.memory_space<vmem>>, vector<8x32xbf16>,
    %305 = vector.extract_strided_slice %11 {offsets = [40, 0], sizes = [8, 1], strides = [1, 1]} : vector<64x1xf32> to vector<8x1xf32>
    %306 = vector.extract_strided_slice %5 {offsets = [40, 0], sizes = [8, 128], strides = [1, 1]} : vector<64x128xf32> to vector<8x128xf32>
    %c0_76 = arith.constant 0 : index
    %c0_77 = arith.constant 0 : index
    %307 = vector.load %arg14[%c0_76, %c0_77] : memref<8x64xbf16, #tpu.memory_space<vmem>>, vector<8x32xbf16>
    %cst_78 = arith.constant dense<0.000000e+00> : vector<8x128xf32>
    %308 = tpu.matmul %307, %6, %cst_78 {dimension_numbers = #tpu.dot_dimension_numbers<[1], [0], [0], [1], [0, 0, 1, 1], [], []>} : vector<8x32xbf16>, vector<32x128xbf16>, vector<8x128xf32> -> vector<8x128xf32>
    %309 = arith.addf %306, %308 : vector<8x128xf32>
    %310 = arith.negf %309 : vector<8x128xf32>
    %311 = math.exp %310 : vector<8x128xf32>
    %cst_79 = arith.constant 1.000000e+00 : f32
    %312 = vector.broadcast %cst_79 : f32 to vector<8x128xf32>
    %313 = arith.addf %312, %311 : vector<8x128xf32>
    %314 = arith.divf %312, %313 : vector<8x128xf32>
    %315 = vector.extract_strided_slice %314 {offsets = [0, 0], sizes = [8, 32], strides = [1, 1]} : vector<8x128xf32> to vector<8x32xf32>
    %316 = vector.extract_strided_slice %314 {offsets = [0, 32], sizes = [8, 32], strides = [1, 1]} : vector<8x128xf32> to vector<8x32xf32>
    %317 = vector.extract_strided_slice %314 {offsets = [0, 96], sizes = [8, 32], strides = [1, 1]} : vector<8x128xf32> to vector<8x32xf32>
    %318 = vector.extract_strided_slice %309 {offsets = [0, 64], sizes = [8, 32], strides = [1, 1]} : vector<8x128xf32> to vector<8x32xf32>
    %319 = math.tanh %318 : vector<8x32xf32>
    %320 = arith.mulf %316, %274 : vector<8x32xf32>
    %321 = arith.mulf %315, %319 : vector<8x32xf32>
    %322 = arith.addf %320, %321 : vector<8x32xf32>
    %323 = math.tanh %322 : vector<8x32xf32>
    %324 = arith.mulf %317, %323 : vector<8x32xf32>
    %325 = arith.subf %324, %270 : vector<8x32xf32>
    %326 = vector.broadcast %305 : vector<8x1xf32> to vector<8x32xf32>
    %327 = arith.mulf %326, %325 : vector<8x32xf32>
    %328 = arith.addf %270, %327 : vector<8x32xf32>
    %329 = arith.subf %322, %274 : vector<8x32xf32>
    %330 = vector.broadcast %305 : vector<8x1xf32> to vector<8x32xf32>
    %331 = arith.mulf %330, %329 : vector<8x32xf32>
    %332 = arith.addf %274, %331 : vector<8x32xf32>
    %333 = arith.truncf %328 : vector<8x32xf32> to vector<8x32xbf16>
    %c0_80 = arith.constant 0 : index
    %c0_81 = arith.constant 0 : index
    %334 = vector.load %arg14[%c0_80, %c0_81] : memref<8x64xbf16, #tpu.memory_space<vmem>>, vector<8x32xbf16>
    tpu.vector_store %arg14[%c0_80, %c0_81], %333 {strides = array<i32>} : memref<8x64xbf16, #tpu.memory_space<vmem>>, vector<8x32xbf16>,
    %c0_82 = arith.constant 0 : index
    %c0_83 = arith.constant 0 : index
    %335 = vector.load %arg14[%c0_82, %c0_83] : memref<8x64xbf16, #tpu.memory_space<vmem>>, vector<8x64xbf16>
    %cst_84 = arith.constant dense<0.000000e+00> : vector<8x128xf32>
    %336 = tpu.matmul %335, %7, %cst_84 {dimension_numbers = #tpu.dot_dimension_numbers<[1], [0], [0], [1], [0, 0, 1, 1], [], []>} : vector<8x64xbf16>, vector<64x128xbf16>, vector<8x128xf32> -> vector<8x128xf32>
    %337 = arith.addf %336, %10 : vector<8x128xf32>
    %338 = arith.negf %337 : vector<8x128xf32>
    %339 = math.exp %338 : vector<8x128xf32>
    %cst_85 = arith.constant 1.000000e+00 : f32
    %340 = vector.broadcast %cst_85 : f32 to vector<8x128xf32>
    %341 = arith.addf %340, %339 : vector<8x128xf32>
    %342 = arith.divf %340, %341 : vector<8x128xf32>
    %343 = vector.extract_strided_slice %342 {offsets = [0, 0], sizes = [8, 32], strides = [1, 1]} : vector<8x128xf32> to vector<8x32xf32>
    %344 = vector.extract_strided_slice %342 {offsets = [0, 32], sizes = [8, 32], strides = [1, 1]} : vector<8x128xf32> to vector<8x32xf32>
    %345 = vector.extract_strided_slice %342 {offsets = [0, 96], sizes = [8, 32], strides = [1, 1]} : vector<8x128xf32> to vector<8x32xf32>
    %346 = vector.extract_strided_slice %337 {offsets = [0, 64], sizes = [8, 32], strides = [1, 1]} : vector<8x128xf32> to vector<8x32xf32>
    %347 = math.tanh %346 : vector<8x32xf32>
    %348 = arith.mulf %344, %302 : vector<8x32xf32>
    %349 = arith.mulf %343, %347 : vector<8x32xf32>
    %350 = arith.addf %348, %349 : vector<8x32xf32>
    %351 = math.tanh %350 : vector<8x32xf32>
    %352 = arith.mulf %345, %351 : vector<8x32xf32>
    %353 = arith.subf %352, %298 : vector<8x32xf32>
    %354 = vector.broadcast %305 : vector<8x1xf32> to vector<8x32xf32>
    %355 = arith.mulf %354, %353 : vector<8x32xf32>
    %356 = arith.addf %298, %355 : vector<8x32xf32>
    %357 = arith.subf %350, %302 : vector<8x32xf32>
    %358 = vector.broadcast %305 : vector<8x1xf32> to vector<8x32xf32>
    %359 = arith.mulf %358, %357 : vector<8x32xf32>
    %360 = arith.addf %302, %359 : vector<8x32xf32>
    %361 = arith.truncf %356 : vector<8x32xf32> to vector<8x32xbf16>
    %c0_86 = arith.constant 0 : index
    %c32_87 = arith.constant 32 : index
    %362 = vector.load %arg14[%c0_86, %c32_87] : memref<8x64xbf16, #tpu.memory_space<vmem>>, vector<8x32xbf16>
    tpu.vector_store %arg14[%c0_86, %c32_87], %361 {strides = array<i32>} : memref<8x64xbf16, #tpu.memory_space<vmem>>, vector<8x32xbf16>,
    %363 = vector.extract_strided_slice %11 {offsets = [48, 0], sizes = [8, 1], strides = [1, 1]} : vector<64x1xf32> to vector<8x1xf32>
    %364 = vector.extract_strided_slice %5 {offsets = [48, 0], sizes = [8, 128], strides = [1, 1]} : vector<64x128xf32> to vector<8x128xf32>
    %c0_88 = arith.constant 0 : index
    %c0_89 = arith.constant 0 : index
    %365 = vector.load %arg14[%c0_88, %c0_89] : memref<8x64xbf16, #tpu.memory_space<vmem>>, vector<8x32xbf16>
    %cst_90 = arith.constant dense<0.000000e+00> : vector<8x128xf32>
    %366 = tpu.matmul %365, %6, %cst_90 {dimension_numbers = #tpu.dot_dimension_numbers<[1], [0], [0], [1], [0, 0, 1, 1], [], []>} : vector<8x32xbf16>, vector<32x128xbf16>, vector<8x128xf32> -> vector<8x128xf32>
    %367 = arith.addf %364, %366 : vector<8x128xf32>
    %368 = arith.negf %367 : vector<8x128xf32>
    %369 = math.exp %368 : vector<8x128xf32>
    %cst_91 = arith.constant 1.000000e+00 : f32
    %370 = vector.broadcast %cst_91 : f32 to vector<8x128xf32>
    %371 = arith.addf %370, %369 : vector<8x128xf32>
    %372 = arith.divf %370, %371 : vector<8x128xf32>
    %373 = vector.extract_strided_slice %372 {offsets = [0, 0], sizes = [8, 32], strides = [1, 1]} : vector<8x128xf32> to vector<8x32xf32>
    %374 = vector.extract_strided_slice %372 {offsets = [0, 32], sizes = [8, 32], strides = [1, 1]} : vector<8x128xf32> to vector<8x32xf32>
    %375 = vector.extract_strided_slice %372 {offsets = [0, 96], sizes = [8, 32], strides = [1, 1]} : vector<8x128xf32> to vector<8x32xf32>
    %376 = vector.extract_strided_slice %367 {offsets = [0, 64], sizes = [8, 32], strides = [1, 1]} : vector<8x128xf32> to vector<8x32xf32>
    %377 = math.tanh %376 : vector<8x32xf32>
    %378 = arith.mulf %374, %332 : vector<8x32xf32>
    %379 = arith.mulf %373, %377 : vector<8x32xf32>
    %380 = arith.addf %378, %379 : vector<8x32xf32>
    %381 = math.tanh %380 : vector<8x32xf32>
    %382 = arith.mulf %375, %381 : vector<8x32xf32>
    %383 = arith.subf %382, %328 : vector<8x32xf32>
    %384 = vector.broadcast %363 : vector<8x1xf32> to vector<8x32xf32>
    %385 = arith.mulf %384, %383 : vector<8x32xf32>
    %386 = arith.addf %328, %385 : vector<8x32xf32>
    %387 = arith.subf %380, %332 : vector<8x32xf32>
    %388 = vector.broadcast %363 : vector<8x1xf32> to vector<8x32xf32>
    %389 = arith.mulf %388, %387 : vector<8x32xf32>
    %390 = arith.addf %332, %389 : vector<8x32xf32>
    %391 = arith.truncf %386 : vector<8x32xf32> to vector<8x32xbf16>
    %c0_92 = arith.constant 0 : index
    %c0_93 = arith.constant 0 : index
    %392 = vector.load %arg14[%c0_92, %c0_93] : memref<8x64xbf16, #tpu.memory_space<vmem>>, vector<8x32xbf16>
    tpu.vector_store %arg14[%c0_92, %c0_93], %391 {strides = array<i32>} : memref<8x64xbf16, #tpu.memory_space<vmem>>, vector<8x32xbf16>,
    %c0_94 = arith.constant 0 : index
    %c0_95 = arith.constant 0 : index
    %393 = vector.load %arg14[%c0_94, %c0_95] : memref<8x64xbf16, #tpu.memory_space<vmem>>, vector<8x64xbf16>
    %cst_96 = arith.constant dense<0.000000e+00> : vector<8x128xf32>
    %394 = tpu.matmul %393, %7, %cst_96 {dimension_numbers = #tpu.dot_dimension_numbers<[1], [0], [0], [1], [0, 0, 1, 1], [], []>} : vector<8x64xbf16>, vector<64x128xbf16>, vector<8x128xf32> -> vector<8x128xf32>
    %395 = arith.addf %394, %10 : vector<8x128xf32>
    %396 = arith.negf %395 : vector<8x128xf32>
    %397 = math.exp %396 : vector<8x128xf32>
    %cst_97 = arith.constant 1.000000e+00 : f32
    %398 = vector.broadcast %cst_97 : f32 to vector<8x128xf32>
    %399 = arith.addf %398, %397 : vector<8x128xf32>
    %400 = arith.divf %398, %399 : vector<8x128xf32>
    %401 = vector.extract_strided_slice %400 {offsets = [0, 0], sizes = [8, 32], strides = [1, 1]} : vector<8x128xf32> to vector<8x32xf32>
    %402 = vector.extract_strided_slice %400 {offsets = [0, 32], sizes = [8, 32], strides = [1, 1]} : vector<8x128xf32> to vector<8x32xf32>
    %403 = vector.extract_strided_slice %400 {offsets = [0, 96], sizes = [8, 32], strides = [1, 1]} : vector<8x128xf32> to vector<8x32xf32>
    %404 = vector.extract_strided_slice %395 {offsets = [0, 64], sizes = [8, 32], strides = [1, 1]} : vector<8x128xf32> to vector<8x32xf32>
    %405 = math.tanh %404 : vector<8x32xf32>
    %406 = arith.mulf %402, %360 : vector<8x32xf32>
    %407 = arith.mulf %401, %405 : vector<8x32xf32>
    %408 = arith.addf %406, %407 : vector<8x32xf32>
    %409 = math.tanh %408 : vector<8x32xf32>
    %410 = arith.mulf %403, %409 : vector<8x32xf32>
    %411 = arith.subf %410, %356 : vector<8x32xf32>
    %412 = vector.broadcast %363 : vector<8x1xf32> to vector<8x32xf32>
    %413 = arith.mulf %412, %411 : vector<8x32xf32>
    %414 = arith.addf %356, %413 : vector<8x32xf32>
    %415 = arith.subf %408, %360 : vector<8x32xf32>
    %416 = vector.broadcast %363 : vector<8x1xf32> to vector<8x32xf32>
    %417 = arith.mulf %416, %415 : vector<8x32xf32>
    %418 = arith.addf %360, %417 : vector<8x32xf32>
    %419 = arith.truncf %414 : vector<8x32xf32> to vector<8x32xbf16>
    %c0_98 = arith.constant 0 : index
    %c32_99 = arith.constant 32 : index
    %420 = vector.load %arg14[%c0_98, %c32_99] : memref<8x64xbf16, #tpu.memory_space<vmem>>, vector<8x32xbf16>
    tpu.vector_store %arg14[%c0_98, %c32_99], %419 {strides = array<i32>} : memref<8x64xbf16, #tpu.memory_space<vmem>>, vector<8x32xbf16>,
    %421 = vector.extract_strided_slice %11 {offsets = [56, 0], sizes = [8, 1], strides = [1, 1]} : vector<64x1xf32> to vector<8x1xf32>
    %422 = vector.extract_strided_slice %5 {offsets = [56, 0], sizes = [8, 128], strides = [1, 1]} : vector<64x128xf32> to vector<8x128xf32>
    %c0_100 = arith.constant 0 : index
    %c0_101 = arith.constant 0 : index
    %423 = vector.load %arg14[%c0_100, %c0_101] : memref<8x64xbf16, #tpu.memory_space<vmem>>, vector<8x32xbf16>
    %cst_102 = arith.constant dense<0.000000e+00> : vector<8x128xf32>
    %424 = tpu.matmul %423, %6, %cst_102 {dimension_numbers = #tpu.dot_dimension_numbers<[1], [0], [0], [1], [0, 0, 1, 1], [], []>} : vector<8x32xbf16>, vector<32x128xbf16>, vector<8x128xf32> -> vector<8x128xf32>
    %425 = arith.addf %422, %424 : vector<8x128xf32>
    %426 = arith.negf %425 : vector<8x128xf32>
    %427 = math.exp %426 : vector<8x128xf32>
    %cst_103 = arith.constant 1.000000e+00 : f32
    %428 = vector.broadcast %cst_103 : f32 to vector<8x128xf32>
    %429 = arith.addf %428, %427 : vector<8x128xf32>
    %430 = arith.divf %428, %429 : vector<8x128xf32>
    %431 = vector.extract_strided_slice %430 {offsets = [0, 0], sizes = [8, 32], strides = [1, 1]} : vector<8x128xf32> to vector<8x32xf32>
    %432 = vector.extract_strided_slice %430 {offsets = [0, 32], sizes = [8, 32], strides = [1, 1]} : vector<8x128xf32> to vector<8x32xf32>
    %433 = vector.extract_strided_slice %430 {offsets = [0, 96], sizes = [8, 32], strides = [1, 1]} : vector<8x128xf32> to vector<8x32xf32>
    %434 = vector.extract_strided_slice %425 {offsets = [0, 64], sizes = [8, 32], strides = [1, 1]} : vector<8x128xf32> to vector<8x32xf32>
    %435 = math.tanh %434 : vector<8x32xf32>
    %436 = arith.mulf %432, %390 : vector<8x32xf32>
    %437 = arith.mulf %431, %435 : vector<8x32xf32>
    %438 = arith.addf %436, %437 : vector<8x32xf32>
    %439 = math.tanh %438 : vector<8x32xf32>
    %440 = arith.mulf %433, %439 : vector<8x32xf32>
    %441 = arith.subf %440, %386 : vector<8x32xf32>
    %442 = vector.broadcast %421 : vector<8x1xf32> to vector<8x32xf32>
    %443 = arith.mulf %442, %441 : vector<8x32xf32>
    %444 = arith.addf %386, %443 : vector<8x32xf32>
    %445 = arith.truncf %444 : vector<8x32xf32> to vector<8x32xbf16>
    %c0_104 = arith.constant 0 : index
    %c0_105 = arith.constant 0 : index
    %446 = vector.load %arg14[%c0_104, %c0_105] : memref<8x64xbf16, #tpu.memory_space<vmem>>, vector<8x32xbf16>
    tpu.vector_store %arg14[%c0_104, %c0_105], %445 {strides = array<i32>} : memref<8x64xbf16, #tpu.memory_space<vmem>>, vector<8x32xbf16>,
    %c0_106 = arith.constant 0 : index
    %c0_107 = arith.constant 0 : index
    %447 = vector.load %arg14[%c0_106, %c0_107] : memref<8x64xbf16, #tpu.memory_space<vmem>>, vector<8x64xbf16>
    %cst_108 = arith.constant dense<0.000000e+00> : vector<8x128xf32>
    %448 = tpu.matmul %447, %7, %cst_108 {dimension_numbers = #tpu.dot_dimension_numbers<[1], [0], [0], [1], [0, 0, 1, 1], [], []>} : vector<8x64xbf16>, vector<64x128xbf16>, vector<8x128xf32> -> vector<8x128xf32>
    %449 = arith.addf %448, %10 : vector<8x128xf32>
    %450 = arith.negf %449 : vector<8x128xf32>
    %451 = math.exp %450 : vector<8x128xf32>
    %cst_109 = arith.constant 1.000000e+00 : f32
    %452 = vector.broadcast %cst_109 : f32 to vector<8x128xf32>
    %453 = arith.addf %452, %451 : vector<8x128xf32>
    %454 = arith.divf %452, %453 : vector<8x128xf32>
    %455 = vector.extract_strided_slice %454 {offsets = [0, 0], sizes = [8, 32], strides = [1, 1]} : vector<8x128xf32> to vector<8x32xf32>
    %456 = vector.extract_strided_slice %454 {offsets = [0, 32], sizes = [8, 32], strides = [1, 1]} : vector<8x128xf32> to vector<8x32xf32>
    %457 = vector.extract_strided_slice %454 {offsets = [0, 96], sizes = [8, 32], strides = [1, 1]} : vector<8x128xf32> to vector<8x32xf32>
    %458 = vector.extract_strided_slice %449 {offsets = [0, 64], sizes = [8, 32], strides = [1, 1]} : vector<8x128xf32> to vector<8x32xf32>
    %459 = math.tanh %458 : vector<8x32xf32>
    %460 = arith.mulf %456, %418 : vector<8x32xf32>
    %461 = arith.mulf %455, %459 : vector<8x32xf32>
    %462 = arith.addf %460, %461 : vector<8x32xf32>
    %463 = math.tanh %462 : vector<8x32xf32>
    %464 = arith.mulf %457, %463 : vector<8x32xf32>
    %465 = arith.subf %464, %414 : vector<8x32xf32>
    %466 = vector.broadcast %421 : vector<8x1xf32> to vector<8x32xf32>
    %467 = arith.mulf %466, %465 : vector<8x32xf32>
    %468 = arith.addf %414, %467 : vector<8x32xf32>
    %469 = arith.truncf %468 : vector<8x32xf32> to vector<8x32xbf16>
    %c0_110 = arith.constant 0 : index
    %c32_111 = arith.constant 32 : index
    %470 = vector.load %arg14[%c0_110, %c32_111] : memref<8x64xbf16, #tpu.memory_space<vmem>>, vector<8x32xbf16>
    tpu.vector_store %arg14[%c0_110, %c32_111], %469 {strides = array<i32>} : memref<8x64xbf16, #tpu.memory_space<vmem>>, vector<8x32xbf16>,
    %c0_112 = arith.constant 0 : index
    %c0_113 = arith.constant 0 : index
    %471 = vector.load %arg2[%c0_112, %c0_113] : memref<8x1xf32, #tpu.memory_space<vmem>>, vector<8x1xf32>
    %472 = vector.broadcast %471 : vector<8x1xf32> to vector<8x32xf32>
    %473 = arith.mulf %472, %468 : vector<8x32xf32>
    %474 = arith.truncf %473 : vector<8x32xf32> to vector<8x32xbf16>
    %c0_114 = arith.constant 0 : index
    %c0_115 = arith.constant 0 : index
    %475 = vector.load %arg9[%c0_114, %c0_115] : memref<32x32xbf16, #tpu.memory_space<vmem>>, vector<32x32xbf16>
    %cst_116 = arith.constant dense<0.000000e+00> : vector<8x32xf32>
    %476 = tpu.matmul %474, %475, %cst_116 {dimension_numbers = #tpu.dot_dimension_numbers<[1], [0], [0], [1], [0, 0, 1, 1], [], []>} : vector<8x32xbf16>, vector<32x32xbf16>, vector<8x32xf32> -> vector<8x32xf32>
    %c0_117 = arith.constant 0 : index
    %c0_118 = arith.constant 0 : index
    %477 = vector.load %arg10[%c0_117, %c0_118] : memref<1x32xf32, #tpu.memory_space<vmem>>, vector<1x32xf32>
    %478 = vector.broadcast %477 : vector<1x32xf32> to vector<8x32xf32>
    %479 = arith.addf %476, %478 : vector<8x32xf32>
    %cst_119 = arith.constant 0.000000e+00 : f32
    %480 = vector.broadcast %cst_119 : f32 to vector<8x32xf32>
    %481 = arith.cmpf ogt, %479, %480 : vector<8x32xf32>
    %cst_120 = arith.constant 2.000000e-01 : f32
    %482 = vector.broadcast %cst_120 : f32 to vector<8x32xf32>
    %483 = arith.mulf %482, %479 : vector<8x32xf32>
    %484 = arith.select %481, %479, %483 : vector<8x32xi1>, vector<8x32xf32>
    %485 = arith.truncf %484 : vector<8x32xf32> to vector<8x32xbf16>
    %c0_121 = arith.constant 0 : index
    %c0_122 = arith.constant 0 : index
    %486 = vector.load %arg11[%c0_121, %c0_122] : memref<32x2xbf16, #tpu.memory_space<vmem>>, vector<32x2xbf16>
    %cst_123 = arith.constant dense<0.000000e+00> : vector<8x2xf32>
    %487 = tpu.matmul %485, %486, %cst_123 {dimension_numbers = #tpu.dot_dimension_numbers<[1], [0], [0], [1], [0, 0, 1, 1], [], []>} : vector<8x32xbf16>, vector<32x2xbf16>, vector<8x2xf32> -> vector<8x2xf32>
    %c0_124 = arith.constant 0 : index
    %c0_125 = arith.constant 0 : index
    %488 = vector.load %arg12[%c0_124, %c0_125] : memref<1x2xf32, #tpu.memory_space<vmem>>, vector<1x2xf32>
    %489 = vector.broadcast %488 : vector<1x2xf32> to vector<8x2xf32>
    %490 = arith.addf %487, %489 : vector<8x2xf32>
    %cst_126 = arith.constant dense<0xFF800000> : vector<8xf32>
    %491 = vector.multi_reduction <maximumf>, %490, %cst_126 [1] : vector<8x2xf32> to vector<8xf32>
    %492 = vector.shape_cast %491 : vector<8xf32> to vector<8x1xf32>
    %493 = vector.broadcast %492 : vector<8x1xf32> to vector<8x2xf32>
    %494 = arith.subf %490, %493 : vector<8x2xf32>
    %495 = math.exp %494 : vector<8x2xf32>
    %cst_127 = arith.constant dense<0.000000e+00> : vector<8xf32>
    %496 = vector.multi_reduction <add>, %495, %cst_127 [1] : vector<8x2xf32> to vector<8xf32>
    %497 = vector.shape_cast %496 : vector<8xf32> to vector<8x1xf32>
    %498 = math.log %497 : vector<8x1xf32>
    %499 = vector.broadcast %498 : vector<8x1xf32> to vector<8x2xf32>
    %500 = arith.subf %494, %499 : vector<8x2xf32>
    %c0_128 = arith.constant 0 : index
    %c0_129 = arith.constant 0 : index
    %501 = vector.load %arg3[%c0_128, %c0_129] : memref<8x2xf32, #tpu.memory_space<vmem>>, vector<8x2xf32>
    %502 = arith.mulf %500, %501 : vector<8x2xf32>
    %cst_130 = arith.constant dense<0.000000e+00> : vector<8xf32>
    %503 = vector.multi_reduction <add>, %502, %cst_130 [1] : vector<8x2xf32> to vector<8xf32>
    %504 = vector.shape_cast %503 : vector<8xf32> to vector<8x1xf32>
    %cst_131 = arith.constant dense<0.000000e+00> : vector<1xf32>
    %505 = vector.multi_reduction <add>, %504, %cst_131 [0] : vector<8x1xf32> to vector<1xf32>
    %506 = vector.shape_cast %505 : vector<1xf32> to vector<1x1xf32>
    %cst_132 = arith.constant 4.000000e+00 : f32
    %507 = vector.broadcast %cst_132 : f32 to vector<1x1xf32>
    %508 = arith.divf %506, %507 : vector<1x1xf32>
    %cst_133 = arith.constant 0.000000e+00 : f32
    %509 = vector.broadcast %cst_133 : f32 to vector<1x1xf32>
    %510 = arith.subf %509, %508 : vector<1x1xf32>
    %c0_134 = arith.constant 0 : index
    %c0_135 = arith.constant 0 : index
    %511 = vector.load %arg13[%c0_134, %c0_135] : memref<1x1xf32, #tpu.memory_space<vmem>>, vector<1x1xf32>
    tpu.vector_store %arg13[%c0_134, %c0_135], %510 {strides = array<i32>} : memref<1x1xf32, #tpu.memory_space<vmem>>, vector<1x1xf32>,
    return
  }
}

</mosaic_0001>

<llo_original>
// kernel: tpu_custom_call.1
$region0: #{tpu_custom_call.1}
  #allocation0 [shape = 'u32[]', space=smem, size = 0x4, offset = 0x4, fixed_abs, tag = 'smem constant byte address 0x4 - core index']
  #allocation1 [shape = 'u32[144,128]{1,0:T(1,128)}', space=vmem, size = 0x12000, scoped, tag = 'internal scratch']
  #allocation2 [shape = 'bf16[8,64]{1,0:T(8,128)(2,1)}', space=vmem, size = 0x800, scoped, tag = 'scratch operand']
  %s0 = inlined_call_operand.vmem [shape: bf16[64,16], index: 0, kind: input, shape index: {}]
  %s1 = inlined_call_operand.vmem [shape: f32[64,1], index: 1, kind: input, shape index: {}]
  %s2 = inlined_call_operand.vmem [shape: f32[8,1], index: 2, kind: input, shape index: {}]
  %s3 = inlined_call_operand.vmem [shape: f32[8,2], index: 3, kind: input, shape index: {}]
  %s4 = inlined_call_operand.vmem [shape: bf16[16,128], index: 4, kind: input, shape index: {}]
  %s5 = inlined_call_operand.vmem [shape: bf16[32,128], index: 5, kind: input, shape index: {}]
  %s6 = inlined_call_operand.vmem [shape: f32[1,128], index: 6, kind: input, shape index: {}]
  %s7 = inlined_call_operand.vmem [shape: bf16[64,128], index: 7, kind: input, shape index: {}]
  %s8 = inlined_call_operand.vmem [shape: f32[1,128], index: 8, kind: input, shape index: {}]
  %s9 = inlined_call_operand.vmem [shape: bf16[32,32], index: 9, kind: input, shape index: {}]
  %s10 = inlined_call_operand.vmem [shape: f32[1,32], index: 10, kind: input, shape index: {}]
  %s11 = inlined_call_operand.vmem [shape: bf16[32,2], index: 11, kind: input, shape index: {}]
  %s12 = inlined_call_operand.vmem [shape: f32[1,2], index: 12, kind: input, shape index: {}]
  %s13 = inlined_call_operand.hbm [shape: f32[1,1], index: 13, kind: output, shape index: {}]
  %s14 = sld [smem:[#allocation0]]
  $region62: #{tpu_custom_call.1} parent=0
    _
  %s16 = ssub.s32 1, %s14
  %s17 = scalar_select 0, %s16, %s14
  $region1: #{tpu_custom_call.1} parent=0
    #allocation3 [shape = 'u8[512]{0}', space=vmem, size = 0x400, scoped, tag = 'output window, operand 0, single buffered']
    #allocation4 [shape = 's32[1]{0}', space=sflag, size = 0x4, scoped, tag = 'scoped memory for tpu_custom_call.1']
    %18 = vsyncpa [#allocation4], 0
    // Predicated region
    $region2: #{tpu_custom_call.1} parent=1 // pred_check
      _
    $region3: #{tpu_custom_call.1} parent=1 // pred_check_branch
      %20 = sbr.rel (0) target = $region5
    $region4: #{tpu_custom_call.1} parent=1 // pred_region
      _
    $region5: #{tpu_custom_call.1} parent=1 // pred_fallthru
      _
    // Predicated region
    $region6: #{tpu_custom_call.1} parent=1 // pred_check
      _
    $region7: #{tpu_custom_call.1} parent=1 // pred_check_branch
      %22 = sbr.rel (0) target = $region9
    $region8: #{tpu_custom_call.1} parent=1 // pred_region
      _
    $region9: #{tpu_custom_call.1} parent=1 // pred_fallthru
      _
    // Predicated region
    $region10: #{tpu_custom_call.1} parent=1 // pred_check
      _
    $region11: #{tpu_custom_call.1} parent=1 // pred_check_branch
      %24 = sbr.rel (0) target = $region13
    $region12: #{tpu_custom_call.1} parent=1 // pred_region
      _
    $region13: #{tpu_custom_call.1} parent=1 // pred_fallthru
      _
    // Predicated region
    $region14: #{tpu_custom_call.1} parent=1 // pred_check
      _
    $region15: #{tpu_custom_call.1} parent=1 // pred_check_branch
      %26 = sbr.rel (0) target = $region17
    $region16: #{tpu_custom_call.1} parent=1 // pred_region
      _
    $region17: #{tpu_custom_call.1} parent=1 // pred_fallthru
      _
    // Predicated region
    $region18: #{tpu_custom_call.1} parent=1 // pred_check
      _
    $region19: #{tpu_custom_call.1} parent=1 // pred_check_branch
      %28 = sbr.rel (0) target = $region21
    $region20: #{tpu_custom_call.1} parent=1 // pred_region
      _
    $region21: #{tpu_custom_call.1} parent=1 // pred_fallthru
      _
    // Predicated region
    $region22: #{tpu_custom_call.1} parent=1 // pred_check
      _
    $region23: #{tpu_custom_call.1} parent=1 // pred_check_branch
      %30 = sbr.rel (0) target = $region25
    $region24: #{tpu_custom_call.1} parent=1 // pred_region
      _
    $region25: #{tpu_custom_call.1} parent=1 // pred_fallthru
      _
    // Predicated region
    $region26: #{tpu_custom_call.1} parent=1 // pred_check
      _
    $region27: #{tpu_custom_call.1} parent=1 // pred_check_branch
      %32 = sbr.rel (0) target = $region29
    $region28: #{tpu_custom_call.1} parent=1 // pred_region
      _
    $region29: #{tpu_custom_call.1} parent=1 // pred_fallthru
      _
    // Predicated region
    $region30: #{tpu_custom_call.1} parent=1 // pred_check
      _
    $region31: #{tpu_custom_call.1} parent=1 // pred_check_branch
      %34 = sbr.rel (0) target = $region33
    $region32: #{tpu_custom_call.1} parent=1 // pred_region
      _
    $region33: #{tpu_custom_call.1} parent=1 // pred_fallthru
      _
    // Predicated region
    $region34: #{tpu_custom_call.1} parent=1 // pred_check
      _
    $region35: #{tpu_custom_call.1} parent=1 // pred_check_branch
      %36 = sbr.rel (0) target = $region37
    $region36: #{tpu_custom_call.1} parent=1 // pred_region
      _
    $region37: #{tpu_custom_call.1} parent=1 // pred_fallthru
      _
    // Predicated region
    $region38: #{tpu_custom_call.1} parent=1 // pred_check
      _
    $region39: #{tpu_custom_call.1} parent=1 // pred_check_branch
      %38 = sbr.rel (0) target = $region41
    $region40: #{tpu_custom_call.1} parent=1 // pred_region
      _
    $region41: #{tpu_custom_call.1} parent=1 // pred_fallthru
      _
    // Predicated region
    $region42: #{tpu_custom_call.1} parent=1 // pred_check
      _
    $region43: #{tpu_custom_call.1} parent=1 // pred_check_branch
      %40 = sbr.rel (0) target = $region45
    $region44: #{tpu_custom_call.1} parent=1 // pred_region
      _
    $region45: #{tpu_custom_call.1} parent=1 // pred_fallthru
      _
    // Predicated region
    $region46: #{tpu_custom_call.1} parent=1 // pred_check
      _
    $region47: #{tpu_custom_call.1} parent=1 // pred_check_branch
      %42 = sbr.rel (0) target = $region49
    $region48: #{tpu_custom_call.1} parent=1 // pred_region
      _
    $region49: #{tpu_custom_call.1} parent=1 // pred_fallthru
      _
    // Predicated region
    $region50: #{tpu_custom_call.1} parent=1 // pred_check
      _
    $region51: #{tpu_custom_call.1} parent=1 // pred_check_branch
      %44 = sbr.rel (0) target = $region53
    $region52: #{tpu_custom_call.1} parent=1 // pred_region
      _
    $region53: #{tpu_custom_call.1} parent=1 // pred_fallthru
      _
    %v46 = vld [vmem:[%s0] sm:$0xf]
    %v47 = vld [vmem:[%s0 + $0x4] sm:$0xf]
    %v48 = vld [vmem:[%s0 + $0x8] sm:$0xf]
    %v49 = vld [vmem:[%s0 + $0xc] sm:$0xf]
    %v50 = vld [vmem:[%s0 + $0x10] sm:$0xf]
    %v51 = vld [vmem:[%s0 + $0x14] sm:$0xf]
    %v52 = vld [vmem:[%s0 + $0x18] sm:$0xf]
    %v53 = vld [vmem:[%s0 + $0x1c] sm:$0xf]
    %v54 = vld [vmem:[%s4] sm:$0xf]
    %v55 = vld [vmem:[%s4 + $0x4] sm:$0xf]
    %v56 = vld [vmem:[%s6] sm:$0x1]
    %v58 = vlaneseq
    %v59 = vshrl.u32 %v58, 7
    %v60 = vsub.s32 0, %v59
    %v61 = vrot.slane %v56, %v60
    %v71 = vunpack.c.l.b16 %v46
    %v72 = vunpack.c.l.b16 %v47
    %v73 = vunpack.c.l.b16 %v48
    %v74 = vunpack.c.l.b16 %v49
    %v75 = vunpack.c.l.b16 %v50
    %v76 = vunpack.c.l.b16 %v51
    %v77 = vunpack.c.l.b16 %v52
    %v78 = vunpack.c.l.b16 %v53
    %v79 = vpack.c.b16 %v72, %v71
    %v80 = vpack.c.b16 %v74, %v73
    %v81 = vpack.c.b16 %v76, %v75
    %v82 = vpack.c.b16 %v78, %v77
    %v85 = vunpack.c.l.b16 %v54
    %v86 = vunpack.c.l.b16 %v55
    %v87 = vpack.c.b16 %v86, %v85
    %vm89 = vcmask 130048
    %v91 = vsel %vm89, %v79, 0
    %v94 = vsel %vm89, %v80, 0
    %v97 = vsel %vm89, %v81, 0
    %v100 = vsel %vm89, %v82, 0
    %102 = vmatprep.subr.bf16.mxu0 0
    %103 = vmatpush1.bf16.msra.mxu0 0
    %104 = vmatprep.subr.bf16.mxu0 0
    %105 = vmatpush1.bf16.msra.mxu0 0
    %106 = vmatprep.subr.bf16.mxu0 0
    %107 = vmatpush1.bf16.msra.mxu0 0
    %108 = vmatprep.subr.bf16.mxu0 0
    %109 = vmatpush1.bf16.msra.mxu0 0
    %110 = vmatprep.subr.bf16.mxu0 0
    %111 = vmatpush1.bf16.msra.mxu0 0
    %112 = vmatprep.subr.bf16.mxu0 0
    %113 = vmatpush1.bf16.msra.mxu0 0
    %114 = vmatprep.subr.bf16.mxu0 0
    %115 = vmatpush1.bf16.msra.mxu0 0
    %116 = vmatprep.subr.bf16.mxu0 0
    %117 = vmatpush1.bf16.msra.mxu0 %v87
    %118 = vmatprep.subr.bf16.mxu0 0
    %119 = vmatpush2.bf16.msra.mxu0 0
    %120 = vmatprep.subr.bf16.mxu0 0
    %121 = vmatpush2.bf16.msra.mxu0 0
    %122 = vmatprep.subr.bf16.mxu0 0
    %123 = vmatpush2.bf16.msra.mxu0 0
    %124 = vmatprep.subr.bf16.mxu0 0
    %125 = vmatpush2.bf16.msra.mxu0 0
    %126 = vmatprep.subr.bf16.mxu0 0
    %127 = vmatpush2.bf16.msra.mxu0 0
    %128 = vmatprep.subr.bf16.mxu0 0
    %129 = vmatpush2.bf16.msra.mxu0 0
    %130 = vmatprep.subr.bf16.mxu0 0
    %131 = vmatpush2.bf16.msra.mxu0 0
    %132 = vmatprep.subr.bf16.mxu0 0
    %133 = vmatpush2.bf16.msra.mxu0 0
    %134 = vmatprep.mubr.bf16.mxu0 0
    %135 = vmatmul.mubr.bf16.gmra.mxu0 %v91
    %v136 = vpop.f32.mrf.mxu0
    %v137 = vadd.f32 %v61, %v136
    %v138 = vpop.f32.mrf.mxu0
    %v139 = vpop.f32.mrf.mxu0
    %v140 = vadd.f32 %v61, %v139
    %v141 = vpop.f32.mrf.mxu0
    %142 = vmatprep.mubr.bf16.mxu0 0
    %143 = vmatmul.mubr.bf16.gmra.mxu0 %v94
    %v144 = vpop.f32.mrf.mxu0
    %v145 = vadd.f32 %v61, %v144
    %v146 = vpop.f32.mrf.mxu0
    %v147 = vpop.f32.mrf.mxu0
    %v148 = vadd.f32 %v61, %v147
    %v149 = vpop.f32.mrf.mxu0
    %150 = vmatprep.mubr.bf16.mxu0 0
    %151 = vmatmul.mubr.bf16.gmra.mxu0 %v97
    %v152 = vpop.f32.mrf.mxu0
    %v153 = vadd.f32 %v61, %v152
    %v154 = vpop.f32.mrf.mxu0
    %v155 = vpop.f32.mrf.mxu0
    %v156 = vadd.f32 %v61, %v155
    %v157 = vpop.f32.mrf.mxu0
    %158 = vmatprep.mubr.bf16.mxu0 0
    %159 = vmatmul.mubr.bf16.gmra.mxu0 %v100
    %v160 = vpop.f32.mrf.mxu0
    %v161 = vadd.f32 %v61, %v160
    %v162 = vpop.f32.mrf.mxu0
    %v163 = vpop.f32.mrf.mxu0
    %v164 = vadd.f32 %v61, %v163
    %v165 = vpop.f32.mrf.mxu0
    %166 = vdwg.mxu0
    %v167 = vld [vmem:[%s5] sm:$0xf]
    %v168 = vld [vmem:[%s5 + $0x4] sm:$0xf]
    %v169 = vld [vmem:[%s5 + $0x8] sm:$0xf]
    %v170 = vld [vmem:[%s5 + $0xc] sm:$0xf]
    %v171 = vld [vmem:[%s7] sm:$0xf]
    %v172 = vld [vmem:[%s7 + $0x4] sm:$0xf]
    %v173 = vld [vmem:[%s7 + $0x8] sm:$0xf]
    %v174 = vld [vmem:[%s7 + $0xc] sm:$0xf]
    %v175 = vld [vmem:[%s7 + $0x10] sm:$0xf]
    %v176 = vld [vmem:[%s7 + $0x14] sm:$0xf]
    %v177 = vld [vmem:[%s7 + $0x18] sm:$0xf]
    %v178 = vld [vmem:[%s7 + $0x1c] sm:$0xf]
    %v179 = vld [vmem:[%s8] sm:$0x1]
    %v181 = vlaneseq
    %v182 = vshrl.u32 %v181, 7
    %v183 = vsub.s32 0, %v182
    %v184 = vrot.slane %v179, %v183
    %v186 = vld [vmem:[%s1] sm:$0xff]
    %v187 = vld [vmem:[%s1 + $0x8] sm:$0xff]
    %v188 = vld [vmem:[%s1 + $0x10] sm:$0xff]
    %v189 = vld [vmem:[%s1 + $0x18] sm:$0xff]
    %v190 = vld [vmem:[%s1 + $0x20] sm:$0xff]
    %v191 = vld [vmem:[%s1 + $0x28] sm:$0xff]
    %v192 = vld [vmem:[%s1 + $0x30] sm:$0xff]
    %v193 = vld [vmem:[%s1 + $0x38] sm:$0xff]
    %vm194 = vcmask 519168
    %195 = vst.msk [vmem:[#allocation2] sm:$0xf] %vm194, 0
    %v196 = vld [vmem:[#allocation2] sm:$0xf]
    %v201 = vunpack.c.l.b16 %v167
    %v202 = vunpack.c.l.b16 %v168
    %v203 = vunpack.c.l.b16 %v169
    %v204 = vunpack.c.l.b16 %v170
    %v205 = vpack.c.b16 %v202, %v201
    %v206 = vpack.c.b16 %v204, %v203
    %vm209 = vcmask 261120
    %v211 = vsel %vm209, %v196, 0
    %213 = vmatprep.subr.bf16.mxu0 0
    %214 = vmatpush1.bf16.msra.mxu0 0
    %215 = vmatprep.subr.bf16.mxu0 0
    %216 = vmatpush1.bf16.msra.mxu0 0
    %217 = vmatprep.subr.bf16.mxu0 0
    %218 = vmatpush1.bf16.msra.mxu0 0
    %219 = vmatprep.subr.bf16.mxu0 0
    %220 = vmatpush1.bf16.msra.mxu0 0
    %221 = vmatprep.subr.bf16.mxu0 0
    %222 = vmatpush1.bf16.msra.mxu0 0
    %223 = vmatprep.subr.bf16.mxu0 0
    %224 = vmatpush1.bf16.msra.mxu0 0
    %225 = vmatprep.subr.bf16.mxu0 0
    %226 = vmatpush1.bf16.msra.mxu0 %v206
    %227 = vmatprep.subr.bf16.mxu0 0
    %228 = vmatpush1.bf16.msra.mxu0 %v205
    %229 = vmatprep.subr.bf16.mxu0 0
    %230 = vmatpush2.bf16.msra.mxu0 0
    %231 = vmatprep.subr.bf16.mxu0 0
    %232 = vmatpush2.bf16.msra.mxu0 0
    %233 = vmatprep.subr.bf16.mxu0 0
    %234 = vmatpush2.bf16.msra.mxu0 0
    %235 = vmatprep.subr.bf16.mxu0 0
    %236 = vmatpush2.bf16.msra.mxu0 0
    %237 = vmatprep.subr.bf16.mxu0 0
    %238 = vmatpush2.bf16.msra.mxu0 0
    %239 = vmatprep.subr.bf16.mxu0 0
    %240 = vmatpush2.bf16.msra.mxu0 0
    %241 = vmatprep.subr.bf16.mxu0 0
    %242 = vmatpush2.bf16.msra.mxu0 0
    %243 = vmatprep.subr.bf16.mxu0 0
    %244 = vmatpush2.bf16.msra.mxu0 0
    %245 = vmatprep.mubr.bf16.mxu0 0
    %246 = vmatmul.mubr.bf16.gmra.mxu0 %v211
    %v247 = vpop.f32.mrf.mxu0
    %v248 = vadd.f32 0.0, %v247
    %v249 = vpop.f32.mrf.mxu0
    %v250 = vpop.f32.mrf.mxu0
    %v251 = vpop.f32.mrf.mxu0
    %252 = vdwg.mxu0
    %v253 = vadd.f32 %v137, %v248
    %v254 = vxor.u32 %v253, 2147483648
    %v255 = vmul.f32 %v254, 1.442695
    %v256 = vpow.pop %v255
    %v257 = vadd.f32 %v256, 1.0
    %v258 = vrcp.pop %v257
    %v259 = vmul.f32 1.0, %v258
    %v260 = vtanh.pop %v253
    %v261 = vmul.f32 %v259, 0.0
    %263 = vrot.lane.b32.xlu0 %v260, 64
    %v264 = vpop.permute.xlu0 %263
    %v266 = vmul.f32 %v259, %v264
    %268 = vrot.lane.b32.xlu0 %v266, 32
    %v269 = vpop.permute.xlu0 %268
    %v271 = vadd.f32 %v261, %v269
    %v272 = vtanh.pop %v271
    %274 = vrot.lane.b32.xlu0 %v272, 64
    %v275 = vpop.permute.xlu0 %274
    %v277 = vmul.f32 %v259, %v275
    %279 = vset.pattern.permute.xlu0 0
    %280 = vperm.xlu0 %279, %v186
    %v281 = vpop.permute.xlu0 %280
    %v283 = vmul.f32 %v281, %v277
    %v284 = vadd.f32 %v283, 0.0
    %v285 = vmul.f32 %v281, %v271
    %v286 = vadd.f32 %v285, 0.0
    %v287 = vpack.c.bf16 %v284, %v284
    %v289 = vunpack.c.l.b16 %v287
    %v290 = vpack.c.b16 %v289, %v289
    %291 = vrot.lane.b32.xlu0 %v290, 32
    %v292 = vpop.permute.xlu0 %291
    %vm294 = vcmask 257024
    %295 = vst.msk [vmem:[#allocation2] sm:$0xf] %vm294, %v292
    %v296 = vld [vmem:[#allocation2] sm:$0xf]
    %v305 = vunpack.c.l.b16 %v171
    %v306 = vunpack.c.l.b16 %v172
    %v307 = vunpack.c.l.b16 %v173
    %v308 = vunpack.c.l.b16 %v174
    %v309 = vunpack.c.l.b16 %v175
    %v310 = vunpack.c.l.b16 %v176
    %v311 = vunpack.c.l.b16 %v177
    %v312 = vunpack.c.l.b16 %v178
    %v313 = vpack.c.b16 %v306, %v305
    %v314 = vpack.c.b16 %v308, %v307
    %v315 = vpack.c.b16 %v310, %v309
    %v316 = vpack.c.b16 %v312, %v311
    %vm321 = vcmask 523264
    %v323 = vsel %vm321, %v296, 0
    %325 = vmatprep.subr.bf16.mxu0 0
    %326 = vmatpush1.bf16.msra.mxu0 0
    %327 = vmatprep.subr.bf16.mxu0 0
    %328 = vmatpush1.bf16.msra.mxu0 0
    %329 = vmatprep.subr.bf16.mxu0 0
    %330 = vmatpush1.bf16.msra.mxu0 0
    %331 = vmatprep.subr.bf16.mxu0 0
    %332 = vmatpush1.bf16.msra.mxu0 0
    %333 = vmatprep.subr.bf16.mxu0 0
    %334 = vmatpush1.bf16.msra.mxu0 %v316
    %335 = vmatprep.subr.bf16.mxu0 0
    %336 = vmatpush1.bf16.msra.mxu0 %v315
    %337 = vmatprep.subr.bf16.mxu0 0
    %338 = vmatpush1.bf16.msra.mxu0 %v314
    %339 = vmatprep.subr.bf16.mxu0 0
    %340 = vmatpush1.bf16.msra.mxu0 %v313
    %341 = vmatprep.subr.bf16.mxu0 0
    %342 = vmatpush2.bf16.msra.mxu0 0
    %343 = vmatprep.subr.bf16.mxu0 0
    %344 = vmatpush2.bf16.msra.mxu0 0
    %345 = vmatprep.subr.bf16.mxu0 0
    %346 = vmatpush2.bf16.msra.mxu0 0
    %347 = vmatprep.subr.bf16.mxu0 0
    %348 = vmatpush2.bf16.msra.mxu0 0
    %349 = vmatprep.subr.bf16.mxu0 0
    %350 = vmatpush2.bf16.msra.mxu0 0
    %351 = vmatprep.subr.bf16.mxu0 0
    %352 = vmatpush2.bf16.msra.mxu0 0
    %353 = vmatprep.subr.bf16.mxu0 0
    %354 = vmatpush2.bf16.msra.mxu0 0
    %355 = vmatprep.subr.bf16.mxu0 0
    %356 = vmatpush2.bf16.msra.mxu0 0
    %357 = vmatprep.mubr.bf16.mxu0 0
    %358 = vmatmul.mubr.bf16.gmra.mxu0 %v323
    %v359 = vpop.f32.mrf.mxu0
    %v360 = vadd.f32 %v184, %v359
    %v361 = vpop.f32.mrf.mxu0
    %v362 = vpop.f32.mrf.mxu0
    %v363 = vpop.f32.mrf.mxu0
    %364 = vdwg.mxu0
    %v365 = vxor.u32 %v360, 2147483648
    %v366 = vmul.f32 %v365, 1.442695
    %v367 = vpow.pop %v366
    %v368 = vadd.f32 %v367, 1.0
    %v369 = vrcp.pop %v368
    %v370 = vmul.f32 1.0, %v369
    %v371 = vtanh.pop %v360
    %v372 = vmul.f32 %v370, 0.0
    %374 = vrot.lane.b32.xlu0 %v371, 64
    %v375 = vpop.permute.xlu0 %374
    %v377 = vmul.f32 %v370, %v375
    %379 = vrot.lane.b32.xlu0 %v377, 32
    %v380 = vpop.permute.xlu0 %379
    %v382 = vadd.f32 %v372, %v380
    %v383 = vtanh.pop %v382
    %385 = vrot.lane.b32.xlu0 %v383, 64
    %v386 = vpop.permute.xlu0 %385
    %v388 = vmul.f32 %v370, %v386
    %v389 = vmul.f32 %v281, %v388
    %v390 = vadd.f32 %v389, 0.0
    %v391 = vmul.f32 %v281, %v382
    %v392 = vadd.f32 %v391, 0.0
    %v393 = vpack.c.bf16 %v390, %v390
    %v395 = vunpack.c.l.b16 %v393
    %v396 = vpack.c.b16 %v395, %v395
    %397 = vrot.lane.b32.xlu0 %v396, 64
    %v398 = vpop.permute.xlu0 %397
    %vm400 = vcmask 519424
    %401 = vst.msk [vmem:[#allocation2] sm:$0xf] %vm400, %v398
    %v402 = vld [vmem:[#allocation2] sm:$0xf]
    %v404 = vsel %vm209, %v402, 0
    %406 = vmatprep.subr.bf16.mxu0 0
    %407 = vmatpush1.bf16.msra.mxu0 0
    %408 = vmatprep.subr.bf16.mxu0 0
    %409 = vmatpush1.bf16.msra.mxu0 0
    %410 = vmatprep.subr.bf16.mxu0 0
    %411 = vmatpush1.bf16.msra.mxu0 0
    %412 = vmatprep.subr.bf16.mxu0 0
    %413 = vmatpush1.bf16.msra.mxu0 0
    %414 = vmatprep.subr.bf16.mxu0 0
    %415 = vmatpush1.bf16.msra.mxu0 0
    %416 = vmatprep.subr.bf16.mxu0 0
    %417 = vmatpush1.bf16.msra.mxu0 0
    %418 = vmatprep.subr.bf16.mxu0 0
    %419 = vmatpush1.bf16.msra.mxu0 %v206
    %420 = vmatprep.subr.bf16.mxu0 0
    %421 = vmatpush1.bf16.msra.mxu0 %v205
    %422 = vmatprep.subr.bf16.mxu0 0
    %423 = vmatpush2.bf16.msra.mxu0 0
    %424 = vmatprep.subr.bf16.mxu0 0
    %425 = vmatpush2.bf16.msra.mxu0 0
    %426 = vmatprep.subr.bf16.mxu0 0
    %427 = vmatpush2.bf16.msra.mxu0 0
    %428 = vmatprep.subr.bf16.mxu0 0
    %429 = vmatpush2.bf16.msra.mxu0 0
    %430 = vmatprep.subr.bf16.mxu0 0
    %431 = vmatpush2.bf16.msra.mxu0 0
    %432 = vmatprep.subr.bf16.mxu0 0
    %433 = vmatpush2.bf16.msra.mxu0 0
    %434 = vmatprep.subr.bf16.mxu0 0
    %435 = vmatpush2.bf16.msra.mxu0 0
    %436 = vmatprep.subr.bf16.mxu0 0
    %437 = vmatpush2.bf16.msra.mxu0 0
    %438 = vmatprep.mubr.bf16.mxu0 0
    %439 = vmatmul.mubr.bf16.gmra.mxu0 %v404
    %v440 = vpop.f32.mrf.mxu0
    %v441 = vadd.f32 0.0, %v440
    %v442 = vpop.f32.mrf.mxu0
    %v443 = vpop.f32.mrf.mxu0
    %v444 = vpop.f32.mrf.mxu0
    %445 = vdwg.mxu0
    %v446 = vadd.f32 %v140, %v441
    %v447 = vxor.u32 %v446, 2147483648
    %v448 = vmul.f32 %v447, 1.442695
    %v449 = vpow.pop %v448
    %v450 = vadd.f32 %v449, 1.0
    %v451 = vrcp.pop %v450
    %v452 = vmul.f32 1.0, %v451
    %v453 = vtanh.pop %v446
    %v454 = vmul.f32 %v452, %v286
    %456 = vrot.lane.b32.xlu0 %v453, 64
    %v457 = vpop.permute.xlu0 %456
    %v459 = vmul.f32 %v452, %v457
    %461 = vrot.lane.b32.xlu0 %v459, 32
    %v462 = vpop.permute.xlu0 %461
    %v464 = vadd.f32 %v454, %v462
    %v465 = vtanh.pop %v464
    %467 = vrot.lane.b32.xlu0 %v465, 64
    %v468 = vpop.permute.xlu0 %467
    %v470 = vmul.f32 %v452, %v468
    %v471 = vsub.f32 %v470, %v284
    %473 = vset.pattern.permute.xlu0 0
    %474 = vperm.xlu0 %473, %v187
    %v475 = vpop.permute.xlu0 %474
    %v477 = vmul.f32 %v475, %v471
    %v478 = vadd.f32 %v284, %v477
    %v479 = vsub.f32 %v464, %v286
    %v480 = vmul.f32 %v475, %v479
    %v481 = vadd.f32 %v286, %v480
    %v482 = vpack.c.bf16 %v478, %v478
    %v484 = vunpack.c.l.b16 %v482
    %v485 = vpack.c.b16 %v484, %v484
    %486 = vrot.lane.b32.xlu0 %v485, 32
    %v487 = vpop.permute.xlu0 %486
    %489 = vst.msk [vmem:[#allocation2] sm:$0xf] %vm294, %v487
    %v490 = vld [vmem:[#allocation2] sm:$0xf]
    %v492 = vsel %vm321, %v490, 0
    %494 = vmatprep.subr.bf16.mxu0 0
    %495 = vmatpush1.bf16.msra.mxu0 0
    %496 = vmatprep.subr.bf16.mxu0 0
    %497 = vmatpush1.bf16.msra.mxu0 0
    %498 = vmatprep.subr.bf16.mxu0 0
    %499 = vmatpush1.bf16.msra.mxu0 0
    %500 = vmatprep.subr.bf16.mxu0 0
    %501 = vmatpush1.bf16.msra.mxu0 0
    %502 = vmatprep.subr.bf16.mxu0 0
    %503 = vmatpush1.bf16.msra.mxu0 %v316
    %504 = vmatprep.subr.bf16.mxu0 0
    %505 = vmatpush1.bf16.msra.mxu0 %v315
    %506 = vmatprep.subr.bf16.mxu0 0
    %507 = vmatpush1.bf16.msra.mxu0 %v314
    %508 = vmatprep.subr.bf16.mxu0 0
    %509 = vmatpush1.bf16.msra.mxu0 %v313
    %510 = vmatprep.subr.bf16.mxu0 0
    %511 = vmatpush2.bf16.msra.mxu0 0
    %512 = vmatprep.subr.bf16.mxu0 0
    %513 = vmatpush2.bf16.msra.mxu0 0
    %514 = vmatprep.subr.bf16.mxu0 0
    %515 = vmatpush2.bf16.msra.mxu0 0
    %516 = vmatprep.subr.bf16.mxu0 0
    %517 = vmatpush2.bf16.msra.mxu0 0
    %518 = vmatprep.subr.bf16.mxu0 0
    %519 = vmatpush2.bf16.msra.mxu0 0
    %520 = vmatprep.subr.bf16.mxu0 0
    %521 = vmatpush2.bf16.msra.mxu0 0
    %522 = vmatprep.subr.bf16.mxu0 0
    %523 = vmatpush2.bf16.msra.mxu0 0
    %524 = vmatprep.subr.bf16.mxu0 0
    %525 = vmatpush2.bf16.msra.mxu0 0
    %526 = vmatprep.mubr.bf16.mxu0 0
    %527 = vmatmul.mubr.bf16.gmra.mxu0 %v492
    %v528 = vpop.f32.mrf.mxu0
    %v529 = vadd.f32 %v184, %v528
    %v530 = vpop.f32.mrf.mxu0
    %v531 = vpop.f32.mrf.mxu0
    %v532 = vpop.f32.mrf.mxu0
    %533 = vdwg.mxu0
    %v534 = vxor.u32 %v529, 2147483648
    %v535 = vmul.f32 %v534, 1.442695
    %v536 = vpow.pop %v535
    %v537 = vadd.f32 %v536, 1.0
    %v538 = vrcp.pop %v537
    %v539 = vmul.f32 1.0, %v538
    %v540 = vtanh.pop %v529
    %v541 = vmul.f32 %v539, %v392
    %543 = vrot.lane.b32.xlu0 %v540, 64
    %v544 = vpop.permute.xlu0 %543
    %v546 = vmul.f32 %v539, %v544
    %548 = vrot.lane.b32.xlu0 %v546, 32
    %v549 = vpop.permute.xlu0 %548
    %v551 = vadd.f32 %v541, %v549
    %v552 = vtanh.pop %v551
    %554 = vrot.lane.b32.xlu0 %v552, 64
    %v555 = vpop.permute.xlu0 %554
    %v557 = vmul.f32 %v539, %v555
    %v558 = vsub.f32 %v557, %v390
    %v559 = vmul.f32 %v475, %v558
    %v560 = vadd.f32 %v390, %v559
    %v561 = vsub.f32 %v551, %v392
    %v562 = vmul.f32 %v475, %v561
    %v563 = vadd.f32 %v392, %v562
    %v564 = vpack.c.bf16 %v560, %v560
    %v566 = vunpack.c.l.b16 %v564
    %v567 = vpack.c.b16 %v566, %v566
    %568 = vrot.lane.b32.xlu0 %v567, 64
    %v569 = vpop.permute.xlu0 %568
    %571 = vst.msk [vmem:[#allocation2] sm:$0xf] %vm400, %v569
    %v572 = vld [vmem:[#allocation2] sm:$0xf]
    %v574 = vsel %vm209, %v572, 0
    %576 = vmatprep.subr.bf16.mxu0 0
    %577 = vmatpush1.bf16.msra.mxu0 0
    %578 = vmatprep.subr.bf16.mxu0 0
    %579 = vmatpush1.bf16.msra.mxu0 0
    %580 = vmatprep.subr.bf16.mxu0 0
    %581 = vmatpush1.bf16.msra.mxu0 0
    %582 = vmatprep.subr.bf16.mxu0 0
    %583 = vmatpush1.bf16.msra.mxu0 0
    %584 = vmatprep.subr.bf16.mxu0 0
    %585 = vmatpush1.bf16.msra.mxu0 0
    %586 = vmatprep.subr.bf16.mxu0 0
    %587 = vmatpush1.bf16.msra.mxu0 0
    %588 = vmatprep.subr.bf16.mxu0 0
    %589 = vmatpush1.bf16.msra.mxu0 %v206
    %590 = vmatprep.subr.bf16.mxu0 0
    %591 = vmatpush1.bf16.msra.mxu0 %v205
    %592 = vmatprep.subr.bf16.mxu0 0
    %593 = vmatpush2.bf16.msra.mxu0 0
    %594 = vmatprep.subr.bf16.mxu0 0
    %595 = vmatpush2.bf16.msra.mxu0 0
    %596 = vmatprep.subr.bf16.mxu0 0
    %597 = vmatpush2.bf16.msra.mxu0 0
    %598 = vmatprep.subr.bf16.mxu0 0
    %599 = vmatpush2.bf16.msra.mxu0 0
    %600 = vmatprep.subr.bf16.mxu0 0
    %601 = vmatpush2.bf16.msra.mxu0 0
    %602 = vmatprep.subr.bf16.mxu0 0
    %603 = vmatpush2.bf16.msra.mxu0 0
    %604 = vmatprep.subr.bf16.mxu0 0
    %605 = vmatpush2.bf16.msra.mxu0 0
    %606 = vmatprep.subr.bf16.mxu0 0
    %607 = vmatpush2.bf16.msra.mxu0 0
    %608 = vmatprep.mubr.bf16.mxu0 0
    %609 = vmatmul.mubr.bf16.gmra.mxu0 %v574
    %v610 = vpop.f32.mrf.mxu0
    %v611 = vadd.f32 0.0, %v610
    %v612 = vpop.f32.mrf.mxu0
    %v613 = vpop.f32.mrf.mxu0
    %v614 = vpop.f32.mrf.mxu0
    %615 = vdwg.mxu0
    %v616 = vadd.f32 %v145, %v611
    %v617 = vxor.u32 %v616, 2147483648
    %v618 = vmul.f32 %v617, 1.442695
    %v619 = vpow.pop %v618
    %v620 = vadd.f32 %v619, 1.0
    %v621 = vrcp.pop %v620
    %v622 = vmul.f32 1.0, %v621
    %v623 = vtanh.pop %v616
    %v624 = vmul.f32 %v622, %v481
    %626 = vrot.lane.b32.xlu0 %v623, 64
    %v627 = vpop.permute.xlu0 %626
    %v629 = vmul.f32 %v622, %v627
    %631 = vrot.lane.b32.xlu0 %v629, 32
    %v632 = vpop.permute.xlu0 %631
    %v634 = vadd.f32 %v624, %v632
    %v635 = vtanh.pop %v634
    %637 = vrot.lane.b32.xlu0 %v635, 64
    %v638 = vpop.permute.xlu0 %637
    %v640 = vmul.f32 %v622, %v638
    %v641 = vsub.f32 %v640, %v478
    %643 = vset.pattern.permute.xlu0 0
    %644 = vperm.xlu0 %643, %v188
    %v645 = vpop.permute.xlu0 %644
    %v647 = vmul.f32 %v645, %v641
    %v648 = vadd.f32 %v478, %v647
    %v649 = vsub.f32 %v634, %v481
    %v650 = vmul.f32 %v645, %v649
    %v651 = vadd.f32 %v481, %v650
    %v652 = vpack.c.bf16 %v648, %v648
    %v654 = vunpack.c.l.b16 %v652
    %v655 = vpack.c.b16 %v654, %v654
    %656 = vrot.lane.b32.xlu0 %v655, 32
    %v657 = vpop.permute.xlu0 %656
    %659 = vst.msk [vmem:[#allocation2] sm:$0xf] %vm294, %v657
    %v660 = vld [vmem:[#allocation2] sm:$0xf]
    %v662 = vsel %vm321, %v660, 0
    %664 = vmatprep.subr.bf16.mxu0 0
    %665 = vmatpush1.bf16.msra.mxu0 0
    %666 = vmatprep.subr.bf16.mxu0 0
    %667 = vmatpush1.bf16.msra.mxu0 0
    %668 = vmatprep.subr.bf16.mxu0 0
    %669 = vmatpush1.bf16.msra.mxu0 0
    %670 = vmatprep.subr.bf16.mxu0 0
    %671 = vmatpush1.bf16.msra.mxu0 0
    %672 = vmatprep.subr.bf16.mxu0 0
    %673 = vmatpush1.bf16.msra.mxu0 %v316
    %674 = vmatprep.subr.bf16.mxu0 0
    %675 = vmatpush1.bf16.msra.mxu0 %v315
    %676 = vmatprep.subr.bf16.mxu0 0
    %677 = vmatpush1.bf16.msra.mxu0 %v314
    %678 = vmatprep.subr.bf16.mxu0 0
    %679 = vmatpush1.bf16.msra.mxu0 %v313
    %680 = vmatprep.subr.bf16.mxu0 0
    %681 = vmatpush2.bf16.msra.mxu0 0
    %682 = vmatprep.subr.bf16.mxu0 0
    %683 = vmatpush2.bf16.msra.mxu0 0
    %684 = vmatprep.subr.bf16.mxu0 0
    %685 = vmatpush2.bf16.msra.mxu0 0
    %686 = vmatprep.subr.bf16.mxu0 0
    %687 = vmatpush2.bf16.msra.mxu0 0
    %688 = vmatprep.subr.bf16.mxu0 0
    %689 = vmatpush2.bf16.msra.mxu0 0
    %690 = vmatprep.subr.bf16.mxu0 0
    %691 = vmatpush2.bf16.msra.mxu0 0
    %692 = vmatprep.subr.bf16.mxu0 0
    %693 = vmatpush2.bf16.msra.mxu0 0
    %694 = vmatprep.subr.bf16.mxu0 0
    %695 = vmatpush2.bf16.msra.mxu0 0
    %696 = vmatprep.mubr.bf16.mxu0 0
    %697 = vmatmul.mubr.bf16.gmra.mxu0 %v662
    %v698 = vpop.f32.mrf.mxu0
    %v699 = vadd.f32 %v184, %v698
    %v700 = vpop.f32.mrf.mxu0
    %v701 = vpop.f32.mrf.mxu0
    %v702 = vpop.f32.mrf.mxu0
    %703 = vdwg.mxu0
    %v704 = vxor.u32 %v699, 2147483648
    %v705 = vmul.f32 %v704, 1.442695
    %v706 = vpow.pop %v705
    %v707 = vadd.f32 %v706, 1.0
    %v708 = vrcp.pop %v707
    %v709 = vmul.f32 1.0, %v708
    %v710 = vtanh.pop %v699
    %v711 = vmul.f32 %v709, %v563
    %713 = vrot.lane.b32.xlu0 %v710, 64
    %v714 = vpop.permute.xlu0 %713
    %v716 = vmul.f32 %v709, %v714
    %718 = vrot.lane.b32.xlu0 %v716, 32
    %v719 = vpop.permute.xlu0 %718
    %v721 = vadd.f32 %v711, %v719
    %v722 = vtanh.pop %v721
    %724 = vrot.lane.b32.xlu0 %v722, 64
    %v725 = vpop.permute.xlu0 %724
    %v727 = vmul.f32 %v709, %v725
    %v728 = vsub.f32 %v727, %v560
    %v729 = vmul.f32 %v645, %v728
    %v730 = vadd.f32 %v560, %v729
    %v731 = vsub.f32 %v721, %v563
    %v732 = vmul.f32 %v645, %v731
    %v733 = vadd.f32 %v563, %v732
    %v734 = vpack.c.bf16 %v730, %v730
    %v736 = vunpack.c.l.b16 %v734
    %v737 = vpack.c.b16 %v736, %v736
    %738 = vrot.lane.b32.xlu0 %v737, 64
    %v739 = vpop.permute.xlu0 %738
    %741 = vst.msk [vmem:[#allocation2] sm:$0xf] %vm400, %v739
    %v742 = vld [vmem:[#allocation2] sm:$0xf]
    %v744 = vsel %vm209, %v742, 0
    %746 = vmatprep.subr.bf16.mxu0 0
    %747 = vmatpush1.bf16.msra.mxu0 0
    %748 = vmatprep.subr.bf16.mxu0 0
    %749 = vmatpush1.bf16.msra.mxu0 0
    %750 = vmatprep.subr.bf16.mxu0 0
    %751 = vmatpush1.bf16.msra.mxu0 0
    %752 = vmatprep.subr.bf16.mxu0 0
    %753 = vmatpush1.bf16.msra.mxu0 0
    %754 = vmatprep.subr.bf16.mxu0 0
    %755 = vmatpush1.bf16.msra.mxu0 0
    %756 = vmatprep.subr.bf16.mxu0 0
    %757 = vmatpush1.bf16.msra.mxu0 0
    %758 = vmatprep.subr.bf16.mxu0 0
    %759 = vmatpush1.bf16.msra.mxu0 %v206
    %760 = vmatprep.subr.bf16.mxu0 0
    %761 = vmatpush1.bf16.msra.mxu0 %v205
    %762 = vmatprep.subr.bf16.mxu0 0
    %763 = vmatpush2.bf16.msra.mxu0 0
    %764 = vmatprep.subr.bf16.mxu0 0
    %765 = vmatpush2.bf16.msra.mxu0 0
    %766 = vmatprep.subr.bf16.mxu0 0
    %767 = vmatpush2.bf16.msra.mxu0 0
    %768 = vmatprep.subr.bf16.mxu0 0
    %769 = vmatpush2.bf16.msra.mxu0 0
    %770 = vmatprep.subr.bf16.mxu0 0
    %771 = vmatpush2.bf16.msra.mxu0 0
    %772 = vmatprep.subr.bf16.mxu0 0
    %773 = vmatpush2.bf16.msra.mxu0 0
    %774 = vmatprep.subr.bf16.mxu0 0
    %775 = vmatpush2.bf16.msra.mxu0 0
    %776 = vmatprep.subr.bf16.mxu0 0
    %777 = vmatpush2.bf16.msra.mxu0 0
    %778 = vmatprep.mubr.bf16.mxu0 0
    %779 = vmatmul.mubr.bf16.gmra.mxu0 %v744
    %v780 = vpop.f32.mrf.mxu0
    %v781 = vadd.f32 0.0, %v780
    %v782 = vpop.f32.mrf.mxu0
    %v783 = vpop.f32.mrf.mxu0
    %v784 = vpop.f32.mrf.mxu0
    %785 = vdwg.mxu0
    %v786 = vadd.f32 %v148, %v781
    %v787 = vxor.u32 %v786, 2147483648
    %v788 = vmul.f32 %v787, 1.442695
    %v789 = vpow.pop %v788
    %v790 = vadd.f32 %v789, 1.0
    %v791 = vrcp.pop %v790
    %v792 = vmul.f32 1.0, %v791
    %v793 = vtanh.pop %v786
    %v794 = vmul.f32 %v792, %v651
    %796 = vrot.lane.b32.xlu0 %v793, 64
    %v797 = vpop.permute.xlu0 %796
    %v799 = vmul.f32 %v792, %v797
    %801 = vrot.lane.b32.xlu0 %v799, 32
    %v802 = vpop.permute.xlu0 %801
    %v804 = vadd.f32 %v794, %v802
    %v805 = vtanh.pop %v804
    %807 = vrot.lane.b32.xlu0 %v805, 64
    %v808 = vpop.permute.xlu0 %807
    %v810 = vmul.f32 %v792, %v808
    %v811 = vsub.f32 %v810, %v648
    %813 = vset.pattern.permute.xlu0 0
    %814 = vperm.xlu0 %813, %v189
    %v815 = vpop.permute.xlu0 %814
    %v817 = vmul.f32 %v815, %v811
    %v818 = vadd.f32 %v648, %v817
    %v819 = vsub.f32 %v804, %v651
    %v820 = vmul.f32 %v815, %v819
    %v821 = vadd.f32 %v651, %v820
    %v822 = vpack.c.bf16 %v818, %v818
    %v824 = vunpack.c.l.b16 %v822
    %v825 = vpack.c.b16 %v824, %v824
    %826 = vrot.lane.b32.xlu0 %v825, 32
    %v827 = vpop.permute.xlu0 %826
    %829 = vst.msk [vmem:[#allocation2] sm:$0xf] %vm294, %v827
    %v830 = vld [vmem:[#allocation2] sm:$0xf]
    %v832 = vsel %vm321, %v830, 0
    %834 = vmatprep.subr.bf16.mxu0 0
    %835 = vmatpush1.bf16.msra.mxu0 0
    %836 = vmatprep.subr.bf16.mxu0 0
    %837 = vmatpush1.bf16.msra.mxu0 0
    %838 = vmatprep.subr.bf16.mxu0 0
    %839 = vmatpush1.bf16.msra.mxu0 0
    %840 = vmatprep.subr.bf16.mxu0 0
    %841 = vmatpush1.bf16.msra.mxu0 0
    %842 = vmatprep.subr.bf16.mxu0 0
    %843 = vmatpush1.bf16.msra.mxu0 %v316
    %844 = vmatprep.subr.bf16.mxu0 0
    %845 = vmatpush1.bf16.msra.mxu0 %v315
    %846 = vmatprep.subr.bf16.mxu0 0
    %847 = vmatpush1.bf16.msra.mxu0 %v314
    %848 = vmatprep.subr.bf16.mxu0 0
    %849 = vmatpush1.bf16.msra.mxu0 %v313
    %850 = vmatprep.subr.bf16.mxu0 0
    %851 = vmatpush2.bf16.msra.mxu0 0
    %852 = vmatprep.subr.bf16.mxu0 0
    %853 = vmatpush2.bf16.msra.mxu0 0
    %854 = vmatprep.subr.bf16.mxu0 0
    %855 = vmatpush2.bf16.msra.mxu0 0
    %856 = vmatprep.subr.bf16.mxu0 0
    %857 = vmatpush2.bf16.msra.mxu0 0
    %858 = vmatprep.subr.bf16.mxu0 0
    %859 = vmatpush2.bf16.msra.mxu0 0
    %860 = vmatprep.subr.bf16.mxu0 0
    %861 = vmatpush2.bf16.msra.mxu0 0
    %862 = vmatprep.subr.bf16.mxu0 0
    %863 = vmatpush2.bf16.msra.mxu0 0
    %864 = vmatprep.subr.bf16.mxu0 0
    %865 = vmatpush2.bf16.msra.mxu0 0
    %866 = vmatprep.mubr.bf16.mxu0 0
    %867 = vmatmul.mubr.bf16.gmra.mxu0 %v832
    %v868 = vpop.f32.mrf.mxu0
    %v869 = vadd.f32 %v184, %v868
    %v870 = vpop.f32.mrf.mxu0
    %v871 = vpop.f32.mrf.mxu0
    %v872 = vpop.f32.mrf.mxu0
    %873 = vdwg.mxu0
    %v874 = vxor.u32 %v869, 2147483648
    %v875 = vmul.f32 %v874, 1.442695
    %v876 = vpow.pop %v875
    %v877 = vadd.f32 %v876, 1.0
    %v878 = vrcp.pop %v877
    %v879 = vmul.f32 1.0, %v878
    %v880 = vtanh.pop %v869
    %v881 = vmul.f32 %v879, %v733
    %883 = vrot.lane.b32.xlu0 %v880, 64
    %v884 = vpop.permute.xlu0 %883
    %v886 = vmul.f32 %v879, %v884
    %888 = vrot.lane.b32.xlu0 %v886, 32
    %v889 = vpop.permute.xlu0 %888
    %v891 = vadd.f32 %v881, %v889
    %v892 = vtanh.pop %v891
    %894 = vrot.lane.b32.xlu0 %v892, 64
    %v895 = vpop.permute.xlu0 %894
    %v897 = vmul.f32 %v879, %v895
    %v898 = vsub.f32 %v897, %v730
    %v899 = vmul.f32 %v815, %v898
    %v900 = vadd.f32 %v730, %v899
    %v901 = vsub.f32 %v891, %v733
    %v902 = vmul.f32 %v815, %v901
    %v903 = vadd.f32 %v733, %v902
    %v904 = vpack.c.bf16 %v900, %v900
    %v906 = vunpack.c.l.b16 %v904
    %v907 = vpack.c.b16 %v906, %v906
    %908 = vrot.lane.b32.xlu0 %v907, 64
    %v909 = vpop.permute.xlu0 %908
    %911 = vst.msk [vmem:[#allocation2] sm:$0xf] %vm400, %v909
    %v912 = vld [vmem:[#allocation2] sm:$0xf]
    %v914 = vsel %vm209, %v912, 0
    %916 = vmatprep.subr.bf16.mxu0 0
    %917 = vmatpush1.bf16.msra.mxu0 0
    %918 = vmatprep.subr.bf16.mxu0 0
    %919 = vmatpush1.bf16.msra.mxu0 0
    %920 = vmatprep.subr.bf16.mxu0 0
    %921 = vmatpush1.bf16.msra.mxu0 0
    %922 = vmatprep.subr.bf16.mxu0 0
    %923 = vmatpush1.bf16.msra.mxu0 0
    %924 = vmatprep.subr.bf16.mxu0 0
    %925 = vmatpush1.bf16.msra.mxu0 0
    %926 = vmatprep.subr.bf16.mxu0 0
    %927 = vmatpush1.bf16.msra.mxu0 0
    %928 = vmatprep.subr.bf16.mxu0 0
    %929 = vmatpush1.bf16.msra.mxu0 %v206
    %930 = vmatprep.subr.bf16.mxu0 0
    %931 = vmatpush1.bf16.msra.mxu0 %v205
    %932 = vmatprep.subr.bf16.mxu0 0
    %933 = vmatpush2.bf16.msra.mxu0 0
    %934 = vmatprep.subr.bf16.mxu0 0
    %935 = vmatpush2.bf16.msra.mxu0 0
    %936 = vmatprep.subr.bf16.mxu0 0
    %937 = vmatpush2.bf16.msra.mxu0 0
    %938 = vmatprep.subr.bf16.mxu0 0
    %939 = vmatpush2.bf16.msra.mxu0 0
    %940 = vmatprep.subr.bf16.mxu0 0
    %941 = vmatpush2.bf16.msra.mxu0 0
    %942 = vmatprep.subr.bf16.mxu0 0
    %943 = vmatpush2.bf16.msra.mxu0 0
    %944 = vmatprep.subr.bf16.mxu0 0
    %945 = vmatpush2.bf16.msra.mxu0 0
    %946 = vmatprep.subr.bf16.mxu0 0
    %947 = vmatpush2.bf16.msra.mxu0 0
    %948 = vmatprep.mubr.bf16.mxu0 0
    %949 = vmatmul.mubr.bf16.gmra.mxu0 %v914
    %v950 = vpop.f32.mrf.mxu0
    %v951 = vadd.f32 0.0, %v950
    %v952 = vpop.f32.mrf.mxu0
    %v953 = vpop.f32.mrf.mxu0
    %v954 = vpop.f32.mrf.mxu0
    %955 = vdwg.mxu0
    %v956 = vadd.f32 %v153, %v951
    %v957 = vxor.u32 %v956, 2147483648
    %v958 = vmul.f32 %v957, 1.442695
    %v959 = vpow.pop %v958
    %v960 = vadd.f32 %v959, 1.0
    %v961 = vrcp.pop %v960
    %v962 = vmul.f32 1.0, %v961
    %v963 = vtanh.pop %v956
    %v964 = vmul.f32 %v962, %v821
    %966 = vrot.lane.b32.xlu0 %v963, 64
    %v967 = vpop.permute.xlu0 %966
    %v969 = vmul.f32 %v962, %v967
    %971 = vrot.lane.b32.xlu0 %v969, 32
    %v972 = vpop.permute.xlu0 %971
    %v974 = vadd.f32 %v964, %v972
    %v975 = vtanh.pop %v974
    %977 = vrot.lane.b32.xlu0 %v975, 64
    %v978 = vpop.permute.xlu0 %977
    %v980 = vmul.f32 %v962, %v978
    %v981 = vsub.f32 %v980, %v818
    %983 = vset.pattern.permute.xlu0 0
    %984 = vperm.xlu0 %983, %v190
    %v985 = vpop.permute.xlu0 %984
    %v987 = vmul.f32 %v985, %v981
    %v988 = vadd.f32 %v818, %v987
    %v989 = vsub.f32 %v974, %v821
    %v990 = vmul.f32 %v985, %v989
    %v991 = vadd.f32 %v821, %v990
    %v992 = vpack.c.bf16 %v988, %v988
    %v994 = vunpack.c.l.b16 %v992
    %v995 = vpack.c.b16 %v994, %v994
    %996 = vrot.lane.b32.xlu0 %v995, 32
    %v997 = vpop.permute.xlu0 %996
    %999 = vst.msk [vmem:[#allocation2] sm:$0xf] %vm294, %v997
    %v1000 = vld [vmem:[#allocation2] sm:$0xf]
    %v1002 = vsel %vm321, %v1000, 0
    %1004 = vmatprep.subr.bf16.mxu0 0
    %1005 = vmatpush1.bf16.msra.mxu0 0
    %1006 = vmatprep.subr.bf16.mxu0 0
    %1007 = vmatpush1.bf16.msra.mxu0 0
    %1008 = vmatprep.subr.bf16.mxu0 0
    %1009 = vmatpush1.bf16.msra.mxu0 0
    %1010 = vmatprep.subr.bf16.mxu0 0
    %1011 = vmatpush1.bf16.msra.mxu0 0
    %1012 = vmatprep.subr.bf16.mxu0 0
    %1013 = vmatpush1.bf16.msra.mxu0 %v316
    %1014 = vmatprep.subr.bf16.mxu0 0
    %1015 = vmatpush1.bf16.msra.mxu0 %v315
    %1016 = vmatprep.subr.bf16.mxu0 0
    %1017 = vmatpush1.bf16.msra.mxu0 %v314
    %1018 = vmatprep.subr.bf16.mxu0 0
    %1019 = vmatpush1.bf16.msra.mxu0 %v313
    %1020 = vmatprep.subr.bf16.mxu0 0
    %1021 = vmatpush2.bf16.msra.mxu0 0
    %1022 = vmatprep.subr.bf16.mxu0 0
    %1023 = vmatpush2.bf16.msra.mxu0 0
    %1024 = vmatprep.subr.bf16.mxu0 0
    %1025 = vmatpush2.bf16.msra.mxu0 0
    %1026 = vmatprep.subr.bf16.mxu0 0
    %1027 = vmatpush2.bf16.msra.mxu0 0
    %1028 = vmatprep.subr.bf16.mxu0 0
    %1029 = vmatpush2.bf16.msra.mxu0 0
    %1030 = vmatprep.subr.bf16.mxu0 0
    %1031 = vmatpush2.bf16.msra.mxu0 0
    %1032 = vmatprep.subr.bf16.mxu0 0
    %1033 = vmatpush2.bf16.msra.mxu0 0
    %1034 = vmatprep.subr.bf16.mxu0 0
    %1035 = vmatpush2.bf16.msra.mxu0 0
    %1036 = vmatprep.mubr.bf16.mxu0 0
    %1037 = vmatmul.mubr.bf16.gmra.mxu0 %v1002
    %v1038 = vpop.f32.mrf.mxu0
    %v1039 = vadd.f32 %v184, %v1038
    %v1040 = vpop.f32.mrf.mxu0
    %v1041 = vpop.f32.mrf.mxu0
    %v1042 = vpop.f32.mrf.mxu0
    %1043 = vdwg.mxu0
    %v1044 = vxor.u32 %v1039, 2147483648
    %v1045 = vmul.f32 %v1044, 1.442695
    %v1046 = vpow.pop %v1045
    %v1047 = vadd.f32 %v1046, 1.0
    %v1048 = vrcp.pop %v1047
    %v1049 = vmul.f32 1.0, %v1048
    %v1050 = vtanh.pop %v1039
    %v1051 = vmul.f32 %v1049, %v903
    %1053 = vrot.lane.b32.xlu0 %v1050, 64
    %v1054 = vpop.permute.xlu0 %1053
    %v1056 = vmul.f32 %v1049, %v1054
    %1058 = vrot.lane.b32.xlu0 %v1056, 32
    %v1059 = vpop.permute.xlu0 %1058
    %v1061 = vadd.f32 %v1051, %v1059
    %v1062 = vtanh.pop %v1061
    %1064 = vrot.lane.b32.xlu0 %v1062, 64
    %v1065 = vpop.permute.xlu0 %1064
    %v1067 = vmul.f32 %v1049, %v1065
    %v1068 = vsub.f32 %v1067, %v900
    %v1069 = vmul.f32 %v985, %v1068
    %v1070 = vadd.f32 %v900, %v1069
    %v1071 = vsub.f32 %v1061, %v903
    %v1072 = vmul.f32 %v985, %v1071
    %v1073 = vadd.f32 %v903, %v1072
    %v1074 = vpack.c.bf16 %v1070, %v1070
    %v1076 = vunpack.c.l.b16 %v1074
    %v1077 = vpack.c.b16 %v1076, %v1076
    %1078 = vrot.lane.b32.xlu0 %v1077, 64
    %v1079 = vpop.permute.xlu0 %1078
    %1081 = vst.msk [vmem:[#allocation2] sm:$0xf] %vm400, %v1079
    %v1082 = vld [vmem:[#allocation2] sm:$0xf]
    %v1084 = vsel %vm209, %v1082, 0
    %1086 = vmatprep.subr.bf16.mxu0 0
    %1087 = vmatpush1.bf16.msra.mxu0 0
    %1088 = vmatprep.subr.bf16.mxu0 0
    %1089 = vmatpush1.bf16.msra.mxu0 0
    %1090 = vmatprep.subr.bf16.mxu0 0
    %1091 = vmatpush1.bf16.msra.mxu0 0
    %1092 = vmatprep.subr.bf16.mxu0 0
    %1093 = vmatpush1.bf16.msra.mxu0 0
    %1094 = vmatprep.subr.bf16.mxu0 0
    %1095 = vmatpush1.bf16.msra.mxu0 0
    %1096 = vmatprep.subr.bf16.mxu0 0
    %1097 = vmatpush1.bf16.msra.mxu0 0
    %1098 = vmatprep.subr.bf16.mxu0 0
    %1099 = vmatpush1.bf16.msra.mxu0 %v206
    %1100 = vmatprep.subr.bf16.mxu0 0
    %1101 = vmatpush1.bf16.msra.mxu0 %v205
    %1102 = vmatprep.subr.bf16.mxu0 0
    %1103 = vmatpush2.bf16.msra.mxu0 0
    %1104 = vmatprep.subr.bf16.mxu0 0
    %1105 = vmatpush2.bf16.msra.mxu0 0
    %1106 = vmatprep.subr.bf16.mxu0 0
    %1107 = vmatpush2.bf16.msra.mxu0 0
    %1108 = vmatprep.subr.bf16.mxu0 0
    %1109 = vmatpush2.bf16.msra.mxu0 0
    %1110 = vmatprep.subr.bf16.mxu0 0
    %1111 = vmatpush2.bf16.msra.mxu0 0
    %1112 = vmatprep.subr.bf16.mxu0 0
    %1113 = vmatpush2.bf16.msra.mxu0 0
    %1114 = vmatprep.subr.bf16.mxu0 0
    %1115 = vmatpush2.bf16.msra.mxu0 0
    %1116 = vmatprep.subr.bf16.mxu0 0
    %1117 = vmatpush2.bf16.msra.mxu0 0
    %1118 = vmatprep.mubr.bf16.mxu0 0
    %1119 = vmatmul.mubr.bf16.gmra.mxu0 %v1084
    %v1120 = vpop.f32.mrf.mxu0
    %v1121 = vadd.f32 0.0, %v1120
    %v1122 = vpop.f32.mrf.mxu0
    %v1123 = vpop.f32.mrf.mxu0
    %v1124 = vpop.f32.mrf.mxu0
    %1125 = vdwg.mxu0
    %v1126 = vadd.f32 %v156, %v1121
    %v1127 = vxor.u32 %v1126, 2147483648
    %v1128 = vmul.f32 %v1127, 1.442695
    %v1129 = vpow.pop %v1128
    %v1130 = vadd.f32 %v1129, 1.0
    %v1131 = vrcp.pop %v1130
    %v1132 = vmul.f32 1.0, %v1131
    %v1133 = vtanh.pop %v1126
    %v1134 = vmul.f32 %v1132, %v991
    %1136 = vrot.lane.b32.xlu0 %v1133, 64
    %v1137 = vpop.permute.xlu0 %1136
    %v1139 = vmul.f32 %v1132, %v1137
    %1141 = vrot.lane.b32.xlu0 %v1139, 32
    %v1142 = vpop.permute.xlu0 %1141
    %v1144 = vadd.f32 %v1134, %v1142
    %v1145 = vtanh.pop %v1144
    %1147 = vrot.lane.b32.xlu0 %v1145, 64
    %v1148 = vpop.permute.xlu0 %1147
    %v1150 = vmul.f32 %v1132, %v1148
    %v1151 = vsub.f32 %v1150, %v988
    %1153 = vset.pattern.permute.xlu0 0
    %1154 = vperm.xlu0 %1153, %v191
    %v1155 = vpop.permute.xlu0 %1154
    %v1157 = vmul.f32 %v1155, %v1151
    %v1158 = vadd.f32 %v988, %v1157
    %v1159 = vsub.f32 %v1144, %v991
    %v1160 = vmul.f32 %v1155, %v1159
    %v1161 = vadd.f32 %v991, %v1160
    %v1162 = vpack.c.bf16 %v1158, %v1158
    %v1164 = vunpack.c.l.b16 %v1162
    %v1165 = vpack.c.b16 %v1164, %v1164
    %1166 = vrot.lane.b32.xlu0 %v1165, 32
    %v1167 = vpop.permute.xlu0 %1166
    %1169 = vst.msk [vmem:[#allocation2] sm:$0xf] %vm294, %v1167
    %v1170 = vld [vmem:[#allocation2] sm:$0xf]
    %v1172 = vsel %vm321, %v1170, 0
    %1174 = vmatprep.subr.bf16.mxu0 0
    %1175 = vmatpush1.bf16.msra.mxu0 0
    %1176 = vmatprep.subr.bf16.mxu0 0
    %1177 = vmatpush1.bf16.msra.mxu0 0
    %1178 = vmatprep.subr.bf16.mxu0 0
    %1179 = vmatpush1.bf16.msra.mxu0 0
    %1180 = vmatprep.subr.bf16.mxu0 0
    %1181 = vmatpush1.bf16.msra.mxu0 0
    %1182 = vmatprep.subr.bf16.mxu0 0
    %1183 = vmatpush1.bf16.msra.mxu0 %v316
    %1184 = vmatprep.subr.bf16.mxu0 0
    %1185 = vmatpush1.bf16.msra.mxu0 %v315
    %1186 = vmatprep.subr.bf16.mxu0 0
    %1187 = vmatpush1.bf16.msra.mxu0 %v314
    %1188 = vmatprep.subr.bf16.mxu0 0
    %1189 = vmatpush1.bf16.msra.mxu0 %v313
    %1190 = vmatprep.subr.bf16.mxu0 0
    %1191 = vmatpush2.bf16.msra.mxu0 0
    %1192 = vmatprep.subr.bf16.mxu0 0
    %1193 = vmatpush2.bf16.msra.mxu0 0
    %1194 = vmatprep.subr.bf16.mxu0 0
    %1195 = vmatpush2.bf16.msra.mxu0 0
    %1196 = vmatprep.subr.bf16.mxu0 0
    %1197 = vmatpush2.bf16.msra.mxu0 0
    %1198 = vmatprep.subr.bf16.mxu0 0
    %1199 = vmatpush2.bf16.msra.mxu0 0
    %1200 = vmatprep.subr.bf16.mxu0 0
    %1201 = vmatpush2.bf16.msra.mxu0 0
    %1202 = vmatprep.subr.bf16.mxu0 0
    %1203 = vmatpush2.bf16.msra.mxu0 0
    %1204 = vmatprep.subr.bf16.mxu0 0
    %1205 = vmatpush2.bf16.msra.mxu0 0
    %1206 = vmatprep.mubr.bf16.mxu0 0
    %1207 = vmatmul.mubr.bf16.gmra.mxu0 %v1172
    %v1208 = vpop.f32.mrf.mxu0
    %v1209 = vadd.f32 %v184, %v1208
    %v1210 = vpop.f32.mrf.mxu0
    %v1211 = vpop.f32.mrf.mxu0
    %v1212 = vpop.f32.mrf.mxu0
    %1213 = vdwg.mxu0
    %v1214 = vxor.u32 %v1209, 2147483648
    %v1215 = vmul.f32 %v1214, 1.442695
    %v1216 = vpow.pop %v1215
    %v1217 = vadd.f32 %v1216, 1.0
    %v1218 = vrcp.pop %v1217
    %v1219 = vmul.f32 1.0, %v1218
    %v1220 = vtanh.pop %v1209
    %v1221 = vmul.f32 %v1219, %v1073
    %1223 = vrot.lane.b32.xlu0 %v1220, 64
    %v1224 = vpop.permute.xlu0 %1223
    %v1226 = vmul.f32 %v1219, %v1224
    %1228 = vrot.lane.b32.xlu0 %v1226, 32
    %v1229 = vpop.permute.xlu0 %1228
    %v1231 = vadd.f32 %v1221, %v1229
    %v1232 = vtanh.pop %v1231
    %1234 = vrot.lane.b32.xlu0 %v1232, 64
    %v1235 = vpop.permute.xlu0 %1234
    %v1237 = vmul.f32 %v1219, %v1235
    %v1238 = vsub.f32 %v1237, %v1070
    %v1239 = vmul.f32 %v1155, %v1238
    %v1240 = vadd.f32 %v1070, %v1239
    %v1241 = vsub.f32 %v1231, %v1073
    %v1242 = vmul.f32 %v1155, %v1241
    %v1243 = vadd.f32 %v1073, %v1242
    %v1244 = vpack.c.bf16 %v1240, %v1240
    %v1246 = vunpack.c.l.b16 %v1244
    %v1247 = vpack.c.b16 %v1246, %v1246
    %1248 = vrot.lane.b32.xlu0 %v1247, 64
    %v1249 = vpop.permute.xlu0 %1248
    %1251 = vst.msk [vmem:[#allocation2] sm:$0xf] %vm400, %v1249
    %v1252 = vld [vmem:[#allocation2] sm:$0xf]
    %v1254 = vsel %vm209, %v1252, 0
    %1256 = vmatprep.subr.bf16.mxu0 0
    %1257 = vmatpush1.bf16.msra.mxu0 0
    %1258 = vmatprep.subr.bf16.mxu0 0
    %1259 = vmatpush1.bf16.msra.mxu0 0
    %1260 = vmatprep.subr.bf16.mxu0 0
    %1261 = vmatpush1.bf16.msra.mxu0 0
    %1262 = vmatprep.subr.bf16.mxu0 0
    %1263 = vmatpush1.bf16.msra.mxu0 0
    %1264 = vmatprep.subr.bf16.mxu0 0
    %1265 = vmatpush1.bf16.msra.mxu0 0
    %1266 = vmatprep.subr.bf16.mxu0 0
    %1267 = vmatpush1.bf16.msra.mxu0 0
    %1268 = vmatprep.subr.bf16.mxu0 0
    %1269 = vmatpush1.bf16.msra.mxu0 %v206
    %1270 = vmatprep.subr.bf16.mxu0 0
    %1271 = vmatpush1.bf16.msra.mxu0 %v205
    %1272 = vmatprep.subr.bf16.mxu0 0
    %1273 = vmatpush2.bf16.msra.mxu0 0
    %1274 = vmatprep.subr.bf16.mxu0 0
    %1275 = vmatpush2.bf16.msra.mxu0 0
    %1276 = vmatprep.subr.bf16.mxu0 0
    %1277 = vmatpush2.bf16.msra.mxu0 0
    %1278 = vmatprep.subr.bf16.mxu0 0
    %1279 = vmatpush2.bf16.msra.mxu0 0
    %1280 = vmatprep.subr.bf16.mxu0 0
    %1281 = vmatpush2.bf16.msra.mxu0 0
    %1282 = vmatprep.subr.bf16.mxu0 0
    %1283 = vmatpush2.bf16.msra.mxu0 0
    %1284 = vmatprep.subr.bf16.mxu0 0
    %1285 = vmatpush2.bf16.msra.mxu0 0
    %1286 = vmatprep.subr.bf16.mxu0 0
    %1287 = vmatpush2.bf16.msra.mxu0 0
    %1288 = vmatprep.mubr.bf16.mxu0 0
    %1289 = vmatmul.mubr.bf16.gmra.mxu0 %v1254
    %v1290 = vpop.f32.mrf.mxu0
    %v1291 = vadd.f32 0.0, %v1290
    %v1292 = vpop.f32.mrf.mxu0
    %v1293 = vpop.f32.mrf.mxu0
    %v1294 = vpop.f32.mrf.mxu0
    %1295 = vdwg.mxu0
    %v1296 = vadd.f32 %v161, %v1291
    %v1297 = vxor.u32 %v1296, 2147483648
    %v1298 = vmul.f32 %v1297, 1.442695
    %v1299 = vpow.pop %v1298
    %v1300 = vadd.f32 %v1299, 1.0
    %v1301 = vrcp.pop %v1300
    %v1302 = vmul.f32 1.0, %v1301
    %v1303 = vtanh.pop %v1296
    %v1304 = vmul.f32 %v1302, %v1161
    %1306 = vrot.lane.b32.xlu0 %v1303, 64
    %v1307 = vpop.permute.xlu0 %1306
    %v1309 = vmul.f32 %v1302, %v1307
    %1311 = vrot.lane.b32.xlu0 %v1309, 32
    %v1312 = vpop.permute.xlu0 %1311
    %v1314 = vadd.f32 %v1304, %v1312
    %v1315 = vtanh.pop %v1314
    %1317 = vrot.lane.b32.xlu0 %v1315, 64
    %v1318 = vpop.permute.xlu0 %1317
    %v1320 = vmul.f32 %v1302, %v1318
    %v1321 = vsub.f32 %v1320, %v1158
    %1323 = vset.pattern.permute.xlu0 0
    %1324 = vperm.xlu0 %1323, %v192
    %v1325 = vpop.permute.xlu0 %1324
    %v1327 = vmul.f32 %v1325, %v1321
    %v1328 = vadd.f32 %v1158, %v1327
    %v1329 = vsub.f32 %v1314, %v1161
    %v1330 = vmul.f32 %v1325, %v1329
    %v1331 = vadd.f32 %v1161, %v1330
    %v1332 = vpack.c.bf16 %v1328, %v1328
    %v1334 = vunpack.c.l.b16 %v1332
    %v1335 = vpack.c.b16 %v1334, %v1334
    %1336 = vrot.lane.b32.xlu0 %v1335, 32
    %v1337 = vpop.permute.xlu0 %1336
    %1339 = vst.msk [vmem:[#allocation2] sm:$0xf] %vm294, %v1337
    %v1340 = vld [vmem:[#allocation2] sm:$0xf]
    %v1342 = vsel %vm321, %v1340, 0
    %1344 = vmatprep.subr.bf16.mxu0 0
    %1345 = vmatpush1.bf16.msra.mxu0 0
    %1346 = vmatprep.subr.bf16.mxu0 0
    %1347 = vmatpush1.bf16.msra.mxu0 0
    %1348 = vmatprep.subr.bf16.mxu0 0
    %1349 = vmatpush1.bf16.msra.mxu0 0
    %1350 = vmatprep.subr.bf16.mxu0 0
    %1351 = vmatpush1.bf16.msra.mxu0 0
    %1352 = vmatprep.subr.bf16.mxu0 0
    %1353 = vmatpush1.bf16.msra.mxu0 %v316
    %1354 = vmatprep.subr.bf16.mxu0 0
    %1355 = vmatpush1.bf16.msra.mxu0 %v315
    %1356 = vmatprep.subr.bf16.mxu0 0
    %1357 = vmatpush1.bf16.msra.mxu0 %v314
    %1358 = vmatprep.subr.bf16.mxu0 0
    %1359 = vmatpush1.bf16.msra.mxu0 %v313
    %1360 = vmatprep.subr.bf16.mxu0 0
    %1361 = vmatpush2.bf16.msra.mxu0 0
    %1362 = vmatprep.subr.bf16.mxu0 0
    %1363 = vmatpush2.bf16.msra.mxu0 0
    %1364 = vmatprep.subr.bf16.mxu0 0
    %1365 = vmatpush2.bf16.msra.mxu0 0
    %1366 = vmatprep.subr.bf16.mxu0 0
    %1367 = vmatpush2.bf16.msra.mxu0 0
    %1368 = vmatprep.subr.bf16.mxu0 0
    %1369 = vmatpush2.bf16.msra.mxu0 0
    %1370 = vmatprep.subr.bf16.mxu0 0
    %1371 = vmatpush2.bf16.msra.mxu0 0
    %1372 = vmatprep.subr.bf16.mxu0 0
    %1373 = vmatpush2.bf16.msra.mxu0 0
    %1374 = vmatprep.subr.bf16.mxu0 0
    %1375 = vmatpush2.bf16.msra.mxu0 0
    %1376 = vmatprep.mubr.bf16.mxu0 0
    %1377 = vmatmul.mubr.bf16.gmra.mxu0 %v1342
    %v1378 = vpop.f32.mrf.mxu0
    %v1379 = vadd.f32 %v184, %v1378
    %v1380 = vpop.f32.mrf.mxu0
    %v1381 = vpop.f32.mrf.mxu0
    %v1382 = vpop.f32.mrf.mxu0
    %1383 = vdwg.mxu0
    %v1384 = vxor.u32 %v1379, 2147483648
    %v1385 = vmul.f32 %v1384, 1.442695
    %v1386 = vpow.pop %v1385
    %v1387 = vadd.f32 %v1386, 1.0
    %v1388 = vrcp.pop %v1387
    %v1389 = vmul.f32 1.0, %v1388
    %v1390 = vtanh.pop %v1379
    %v1391 = vmul.f32 %v1389, %v1243
    %1393 = vrot.lane.b32.xlu0 %v1390, 64
    %v1394 = vpop.permute.xlu0 %1393
    %v1396 = vmul.f32 %v1389, %v1394
    %1398 = vrot.lane.b32.xlu0 %v1396, 32
    %v1399 = vpop.permute.xlu0 %1398
    %v1401 = vadd.f32 %v1391, %v1399
    %v1402 = vtanh.pop %v1401
    %1404 = vrot.lane.b32.xlu0 %v1402, 64
    %v1405 = vpop.permute.xlu0 %1404
    %v1407 = vmul.f32 %v1389, %v1405
    %v1408 = vsub.f32 %v1407, %v1240
    %v1409 = vmul.f32 %v1325, %v1408
    %v1410 = vadd.f32 %v1240, %v1409
    %v1411 = vsub.f32 %v1401, %v1243
    %v1412 = vmul.f32 %v1325, %v1411
    %v1413 = vadd.f32 %v1243, %v1412
    %v1414 = vpack.c.bf16 %v1410, %v1410
    %v1416 = vunpack.c.l.b16 %v1414
    %v1417 = vpack.c.b16 %v1416, %v1416
    %1418 = vrot.lane.b32.xlu0 %v1417, 64
    %v1419 = vpop.permute.xlu0 %1418
    %1421 = vst.msk [vmem:[#allocation2] sm:$0xf] %vm400, %v1419
    %v1422 = vld [vmem:[#allocation2] sm:$0xf]
    %v1424 = vsel %vm209, %v1422, 0
    %1426 = vmatprep.subr.bf16.mxu0 0
    %1427 = vmatpush1.bf16.msra.mxu0 0
    %1428 = vmatprep.subr.bf16.mxu0 0
    %1429 = vmatpush1.bf16.msra.mxu0 0
    %1430 = vmatprep.subr.bf16.mxu0 0
    %1431 = vmatpush1.bf16.msra.mxu0 0
    %1432 = vmatprep.subr.bf16.mxu0 0
    %1433 = vmatpush1.bf16.msra.mxu0 0
    %1434 = vmatprep.subr.bf16.mxu0 0
    %1435 = vmatpush1.bf16.msra.mxu0 0
    %1436 = vmatprep.subr.bf16.mxu0 0
    %1437 = vmatpush1.bf16.msra.mxu0 0
    %1438 = vmatprep.subr.bf16.mxu0 0
    %1439 = vmatpush1.bf16.msra.mxu0 %v206
    %1440 = vmatprep.subr.bf16.mxu0 0
    %1441 = vmatpush1.bf16.msra.mxu0 %v205
    %1442 = vmatprep.subr.bf16.mxu0 0
    %1443 = vmatpush2.bf16.msra.mxu0 0
    %1444 = vmatprep.subr.bf16.mxu0 0
    %1445 = vmatpush2.bf16.msra.mxu0 0
    %1446 = vmatprep.subr.bf16.mxu0 0
    %1447 = vmatpush2.bf16.msra.mxu0 0
    %1448 = vmatprep.subr.bf16.mxu0 0
    %1449 = vmatpush2.bf16.msra.mxu0 0
    %1450 = vmatprep.subr.bf16.mxu0 0
    %1451 = vmatpush2.bf16.msra.mxu0 0
    %1452 = vmatprep.subr.bf16.mxu0 0
    %1453 = vmatpush2.bf16.msra.mxu0 0
    %1454 = vmatprep.subr.bf16.mxu0 0
    %1455 = vmatpush2.bf16.msra.mxu0 0
    %1456 = vmatprep.subr.bf16.mxu0 0
    %1457 = vmatpush2.bf16.msra.mxu0 0
    %1458 = vmatprep.mubr.bf16.mxu0 0
    %1459 = vmatmul.mubr.bf16.gmra.mxu0 %v1424
    %v1460 = vpop.f32.mrf.mxu0
    %v1461 = vadd.f32 0.0, %v1460
    %v1462 = vpop.f32.mrf.mxu0
    %v1463 = vpop.f32.mrf.mxu0
    %v1464 = vpop.f32.mrf.mxu0
    %1465 = vdwg.mxu0
    %v1466 = vadd.f32 %v164, %v1461
    %v1467 = vxor.u32 %v1466, 2147483648
    %v1468 = vmul.f32 %v1467, 1.442695
    %v1469 = vpow.pop %v1468
    %v1470 = vadd.f32 %v1469, 1.0
    %v1471 = vrcp.pop %v1470
    %v1472 = vmul.f32 1.0, %v1471
    %v1473 = vtanh.pop %v1466
    %v1474 = vmul.f32 %v1472, %v1331
    %1476 = vrot.lane.b32.xlu0 %v1473, 64
    %v1477 = vpop.permute.xlu0 %1476
    %v1479 = vmul.f32 %v1472, %v1477
    %1481 = vrot.lane.b32.xlu0 %v1479, 32
    %v1482 = vpop.permute.xlu0 %1481
    %v1484 = vadd.f32 %v1474, %v1482
    %v1485 = vtanh.pop %v1484
    %1487 = vrot.lane.b32.xlu0 %v1485, 64
    %v1488 = vpop.permute.xlu0 %1487
    %v1490 = vmul.f32 %v1472, %v1488
    %v1491 = vsub.f32 %v1490, %v1328
    %1493 = vset.pattern.permute.xlu0 0
    %1494 = vperm.xlu0 %1493, %v193
    %v1495 = vpop.permute.xlu0 %1494
    %v1497 = vmul.f32 %v1495, %v1491
    %v1498 = vadd.f32 %v1328, %v1497
    %v1499 = vpack.c.bf16 %v1498, %v1498
    %v1501 = vunpack.c.l.b16 %v1499
    %v1502 = vpack.c.b16 %v1501, %v1501
    %1503 = vrot.lane.b32.xlu0 %v1502, 32
    %v1504 = vpop.permute.xlu0 %1503
    %1506 = vst.msk [vmem:[#allocation2] sm:$0xf] %vm294, %v1504
    %v1507 = vld [vmem:[#allocation2] sm:$0xf]
    %v1509 = vsel %vm321, %v1507, 0
    %1511 = vmatprep.subr.bf16.mxu0 0
    %1512 = vmatpush1.bf16.msra.mxu0 0
    %1513 = vmatprep.subr.bf16.mxu0 0
    %1514 = vmatpush1.bf16.msra.mxu0 0
    %1515 = vmatprep.subr.bf16.mxu0 0
    %1516 = vmatpush1.bf16.msra.mxu0 0
    %1517 = vmatprep.subr.bf16.mxu0 0
    %1518 = vmatpush1.bf16.msra.mxu0 0
    %1519 = vmatprep.subr.bf16.mxu0 0
    %1520 = vmatpush1.bf16.msra.mxu0 %v316
    %1521 = vmatprep.subr.bf16.mxu0 0
    %1522 = vmatpush1.bf16.msra.mxu0 %v315
    %1523 = vmatprep.subr.bf16.mxu0 0
    %1524 = vmatpush1.bf16.msra.mxu0 %v314
    %1525 = vmatprep.subr.bf16.mxu0 0
    %1526 = vmatpush1.bf16.msra.mxu0 %v313
    %1527 = vmatprep.subr.bf16.mxu0 0
    %1528 = vmatpush2.bf16.msra.mxu0 0
    %1529 = vmatprep.subr.bf16.mxu0 0
    %1530 = vmatpush2.bf16.msra.mxu0 0
    %1531 = vmatprep.subr.bf16.mxu0 0
    %1532 = vmatpush2.bf16.msra.mxu0 0
    %1533 = vmatprep.subr.bf16.mxu0 0
    %1534 = vmatpush2.bf16.msra.mxu0 0
    %1535 = vmatprep.subr.bf16.mxu0 0
    %1536 = vmatpush2.bf16.msra.mxu0 0
    %1537 = vmatprep.subr.bf16.mxu0 0
    %1538 = vmatpush2.bf16.msra.mxu0 0
    %1539 = vmatprep.subr.bf16.mxu0 0
    %1540 = vmatpush2.bf16.msra.mxu0 0
    %1541 = vmatprep.subr.bf16.mxu0 0
    %1542 = vmatpush2.bf16.msra.mxu0 0
    %1543 = vmatprep.mubr.bf16.mxu0 0
    %1544 = vmatmul.mubr.bf16.gmra.mxu0 %v1509
    %v1545 = vpop.f32.mrf.mxu0
    %v1546 = vadd.f32 %v184, %v1545
    %v1547 = vpop.f32.mrf.mxu0
    %v1548 = vpop.f32.mrf.mxu0
    %v1549 = vpop.f32.mrf.mxu0
    %1550 = vdwg.mxu0
    %v1551 = vxor.u32 %v1546, 2147483648
    %v1552 = vmul.f32 %v1551, 1.442695
    %v1553 = vpow.pop %v1552
    %v1554 = vadd.f32 %v1553, 1.0
    %v1555 = vrcp.pop %v1554
    %v1556 = vmul.f32 1.0, %v1555
    %v1557 = vtanh.pop %v1546
    %v1558 = vmul.f32 %v1556, %v1413
    %1560 = vrot.lane.b32.xlu0 %v1557, 64
    %v1561 = vpop.permute.xlu0 %1560
    %v1563 = vmul.f32 %v1556, %v1561
    %1565 = vrot.lane.b32.xlu0 %v1563, 32
    %v1566 = vpop.permute.xlu0 %1565
    %v1568 = vadd.f32 %v1558, %v1566
    %v1569 = vtanh.pop %v1568
    %1571 = vrot.lane.b32.xlu0 %v1569, 64
    %v1572 = vpop.permute.xlu0 %1571
    %v1574 = vmul.f32 %v1556, %v1572
    %v1575 = vsub.f32 %v1574, %v1410
    %v1576 = vmul.f32 %v1495, %v1575
    %v1577 = vadd.f32 %v1410, %v1576
    %v1578 = vpack.c.bf16 %v1577, %v1577
    %v1580 = vunpack.c.l.b16 %v1578
    %v1581 = vpack.c.b16 %v1580, %v1580
    %1582 = vrot.lane.b32.xlu0 %v1581, 64
    %v1583 = vpop.permute.xlu0 %1582
    %1585 = vst.msk [vmem:[#allocation2] sm:$0xf] %vm400, %v1583
    %v1586 = vld [vmem:[%s2] sm:$0xff]
    %1588 = vset.pattern.permute.xlu0 0
    %1589 = vperm.xlu0 %1588, %v1586
    %v1590 = vpop.permute.xlu0 %1589
    %v1592 = vmul.f32 %v1590, %v1577
    %v1593 = vpack.c.bf16 %v1592, %v1592
    %v1594 = vld [vmem:[%s9] sm:$0xf]
    %v1595 = vld [vmem:[%s9 + $0x4] sm:$0xf]
    %v1596 = vld [vmem:[%s9 + $0x8] sm:$0xf]
    %v1597 = vld [vmem:[%s9 + $0xc] sm:$0xf]
    %v1598 = vld [vmem:[%s10] sm:$0x1]
    %v1600 = vlaneseq
    %v1601 = vshrl.u32 %v1600, 7
    %v1602 = vsub.s32 0, %v1601
    %v1603 = vrot.slane %v1598, %v1602
    %1606 = vrot.lane.b32.xlu0 %v1593, 32
    %v1607 = vpop.permute.xlu0 %1606
    %v1612 = vunpack.c.l.b16 %v1594
    %v1613 = vunpack.c.l.b16 %v1595
    %v1614 = vunpack.c.l.b16 %v1596
    %v1615 = vunpack.c.l.b16 %v1597
    %v1616 = vpack.c.b16 %v1613, %v1612
    %v1617 = vpack.c.b16 %v1615, %v1614
    %v1621 = vsel %vm209, %v1607, 0
    %1623 = vmatprep.subr.bf16.mxu0 0
    %1624 = vmatpush1.bf16.msra.mxu0 0
    %1625 = vmatprep.subr.bf16.mxu0 0
    %1626 = vmatpush1.bf16.msra.mxu0 0
    %1627 = vmatprep.subr.bf16.mxu0 0
    %1628 = vmatpush1.bf16.msra.mxu0 0
    %1629 = vmatprep.subr.bf16.mxu0 0
    %1630 = vmatpush1.bf16.msra.mxu0 0
    %1631 = vmatprep.subr.bf16.mxu0 0
    %1632 = vmatpush1.bf16.msra.mxu0 0
    %1633 = vmatprep.subr.bf16.mxu0 0
    %1634 = vmatpush1.bf16.msra.mxu0 0
    %1635 = vmatprep.subr.bf16.mxu0 0
    %1636 = vmatpush1.bf16.msra.mxu0 %v1617
    %1637 = vmatprep.subr.bf16.mxu0 0
    %1638 = vmatpush1.bf16.msra.mxu0 %v1616
    %1639 = vmatprep.subr.bf16.mxu0 0
    %1640 = vmatpush2.bf16.msra.mxu0 0
    %1641 = vmatprep.subr.bf16.mxu0 0
    %1642 = vmatpush2.bf16.msra.mxu0 0
    %1643 = vmatprep.subr.bf16.mxu0 0
    %1644 = vmatpush2.bf16.msra.mxu0 0
    %1645 = vmatprep.subr.bf16.mxu0 0
    %1646 = vmatpush2.bf16.msra.mxu0 0
    %1647 = vmatprep.subr.bf16.mxu0 0
    %1648 = vmatpush2.bf16.msra.mxu0 0
    %1649 = vmatprep.subr.bf16.mxu0 0
    %1650 = vmatpush2.bf16.msra.mxu0 0
    %1651 = vmatprep.subr.bf16.mxu0 0
    %1652 = vmatpush2.bf16.msra.mxu0 0
    %1653 = vmatprep.subr.bf16.mxu0 0
    %1654 = vmatpush2.bf16.msra.mxu0 0
    %1655 = vmatprep.mubr.bf16.mxu0 0
    %1656 = vmatmul.mubr.bf16.gmra.mxu0 %v1621
    %v1657 = vpop.f32.mrf.mxu0
    %v1658 = vadd.f32 %v1603, %v1657
    %v1659 = vpop.f32.mrf.mxu0
    %v1660 = vpop.f32.mrf.mxu0
    %v1661 = vpop.f32.mrf.mxu0
    %1662 = vdwg.mxu0
    %vm1663 = vcmp.gt.f32.partialorder %v1658, 0.0
    %v1664 = vmul.f32 %v1658, 0.2
    %v1665 = vsel %vm1663, %v1658, %v1664
    %v1666 = vpack.c.bf16 %v1665, %v1665
    %v1667 = vld [vmem:[%s11] sm:$0xf]
    %v1668 = vld [vmem:[%s11 + $0x4] sm:$0xf]
    %v1669 = vld [vmem:[%s11 + $0x8] sm:$0xf]
    %v1670 = vld [vmem:[%s11 + $0xc] sm:$0xf]
    %v1671 = vld [vmem:[%s12] sm:$0x1]
    %v1673 = vlaneseq
    %v1674 = vshrl.u32 %v1673, 7
    %v1675 = vsub.s32 0, %v1674
    %v1676 = vrot.slane %v1671, %v1675
    %v1682 = vunpack.c.l.b16 %v1667
    %v1683 = vunpack.c.l.b16 %v1668
    %v1684 = vunpack.c.l.b16 %v1669
    %v1685 = vunpack.c.l.b16 %v1670
    %v1686 = vpack.c.b16 %v1683, %v1682
    %v1687 = vpack.c.b16 %v1685, %v1684
    %v1691 = vsel %vm209, %v1666, 0
    %1693 = vmatprep.subr.bf16.mxu0 0
    %1694 = vmatpush1.bf16.msra.mxu0 0
    %1695 = vmatprep.subr.bf16.mxu0 0
    %1696 = vmatpush1.bf16.msra.mxu0 0
    %1697 = vmatprep.subr.bf16.mxu0 0
    %1698 = vmatpush1.bf16.msra.mxu0 0
    %1699 = vmatprep.subr.bf16.mxu0 0
    %1700 = vmatpush1.bf16.msra.mxu0 0
    %1701 = vmatprep.subr.bf16.mxu0 0
    %1702 = vmatpush1.bf16.msra.mxu0 0
    %1703 = vmatprep.subr.bf16.mxu0 0
    %1704 = vmatpush1.bf16.msra.mxu0 0
    %1705 = vmatprep.subr.bf16.mxu0 0
    %1706 = vmatpush1.bf16.msra.mxu0 %v1687
    %1707 = vmatprep.subr.bf16.mxu0 0
    %1708 = vmatpush1.bf16.msra.mxu0 %v1686
    %1709 = vmatprep.subr.bf16.mxu0 0
    %1710 = vmatpush2.bf16.msra.mxu0 0
    %1711 = vmatprep.subr.bf16.mxu0 0
    %1712 = vmatpush2.bf16.msra.mxu0 0
    %1713 = vmatprep.subr.bf16.mxu0 0
    %1714 = vmatpush2.bf16.msra.mxu0 0
    %1715 = vmatprep.subr.bf16.mxu0 0
    %1716 = vmatpush2.bf16.msra.mxu0 0
    %1717 = vmatprep.subr.bf16.mxu0 0
    %1718 = vmatpush2.bf16.msra.mxu0 0
    %1719 = vmatprep.subr.bf16.mxu0 0
    %1720 = vmatpush2.bf16.msra.mxu0 0
    %1721 = vmatprep.subr.bf16.mxu0 0
    %1722 = vmatpush2.bf16.msra.mxu0 0
    %1723 = vmatprep.subr.bf16.mxu0 0
    %1724 = vmatpush2.bf16.msra.mxu0 0
    %1725 = vmatprep.mubr.bf16.mxu0 0
    %1726 = vmatmul.mubr.bf16.gmra.mxu0 %v1691
    %v1727 = vpop.f32.mrf.mxu0
    %v1728 = vadd.f32 %v1676, %v1727
    %v1729 = vpop.f32.mrf.mxu0
    %v1730 = vpop.f32.mrf.mxu0
    %v1731 = vpop.f32.mrf.mxu0
    %1732 = vdwg.mxu0
    %vm1733 = vcmask 15360
    %v1734 = vsel %vm1733, %v1728, -inf
    %1735 = vmax.xlane.f32.xlu0 %v1734
    %v1736 = vpop.xlane.xlu0 %1735
    %v1737 = vsub.f32 %v1728, %v1736
    %v1738 = vmul.f32 %v1737, 1.442695
    %v1739 = vpow.pop %v1738
    %v1740 = vsel %vm1733, %v1739, 0.0
    %1741 = vadd.xlane.f32.xlu0 %v1740
    %v1742 = vpop.xlane.xlu0 %1741
    %v1743 = vlog2.pop %v1742
    %v1744 = vmul.f32 %v1743, 0.6931472
    %v1745 = vsub.f32 %v1737, %v1744
    %v1746 = vld [vmem:[%s3] sm:$0xff]
    %v1747 = vmul.f32 %v1745, %v1746
    %v1748 = vsel %vm1733, %v1747, 0.0
    %1749 = vadd.xlane.f32.xlu0 %v1748
    %v1750 = vpop.xlane.xlu0 %1749
    %v1751 = vrot.slane %v1750, 4
    %v1752 = vadd.f32 %v1750, %v1751
    %v1753 = vrot.slane %v1752, 2
    %v1754 = vadd.f32 %v1752, %v1753
    %v1755 = vrot.slane %v1754, 1
    %v1756 = vadd.f32 %v1754, %v1755
    %v1757 = vrcp.pop 4.0
    %v1758 = vmul.f32 %v1756, %v1757
    %v1759 = vsub.f32 0.0, %v1758
    %vm1760 = vcmask 0
    %1761 = vst.msk [vmem:[#allocation3] sm:$0x1] %vm1760, %v1759
    // Predicated region
    $region54: #{tpu_custom_call.1} parent=1 // pred_check
      _
    $region55: #{tpu_custom_call.1} parent=1 // pred_check_branch
      %1763 = sbr.rel (0) target = $region57
    $region56: #{tpu_custom_call.1} parent=1 // pred_region
      %s1765 = ssub.s32 16, 16
      %1766 = vsyncadd [#allocation4], %s1765
      %s1768 = sshll.u32 [#allocation3], 4
      %s1769 = int_to_ptr.vmem [resolvable:$true] %s1768
      %1771 = dma.vmem_to_hbm [thread:$0]  %s1769, 16, %s13, [#allocation4]
    $region57: #{tpu_custom_call.1} parent=1 // pred_fallthru
      _
    // Predicated region
    $region58: #{tpu_custom_call.1} parent=1 // pred_check
      _
    $region59: #{tpu_custom_call.1} parent=1 // pred_check_branch
      %1773 = sbr.rel (0) target = $region61
    $region60: #{tpu_custom_call.1} parent=1 // pred_region
      %1774 = dma.done [#allocation4], 16
    $region61: #{tpu_custom_call.1} parent=1 // pred_fallthru
      _
    %1775 = vsyncpa [#allocation4], 1

</llo_original>
